<compile_context>
chip_gen: v7x
topology: tpu7x:2x2x1
jax: 0.10.0
libtpu: 0.0.40
codegen_flags: <defaults>
</compile_context>

<pallas_src>
import jax
import jax.numpy as jnp
from jax.experimental import pallas as pl
from jax.experimental.pallas import tpu as pltpu

# Hyperparameters fixed by CNN.__init__
KS = (2, 3, 4, 5, 6)
N_FILTERS = 20
FPAD = 128            # lane-padded feature width (100 -> 128)
WPAD = 512            # lane-padded packed conv-weight width (400 -> 512)


def _round_up(x, m):
    return ((x + m - 1) // m) * m


def make_cnn_kernel(NB, words, words_pad, n_true):
    """NB sentences per grid step; `words` is the true sentence length."""
    NF = N_FILTERS

    def kernel(emb_ref, w_ref, b_ref, out_ref):
        # emb_ref: (NB*words_pad, E) bf16   w_ref: (E, WPAD) bf16
        # b_ref:   (1, FPAD) f32            out_ref: (1, 8, FPAD) f32
        # One MXU matmul per block computes every tap of every conv kernel.
        y = jnp.dot(emb_ref[...], w_ref[...], preferred_element_type=jnp.float32)
        y = y.reshape(NB, words_pad, WPAD)

        col = 0
        pooled = []
        for K in KS:                       # static unroll (5 kernels)
            t_out = words - K + 1
            # Conv2d(1, NF, (K, E)) == sum over K taps of time-shifted columns.
            conv = y[:, 0:t_out, col:col + NF]
            for k in range(1, K):          # static unroll (K <= 6)
                conv = conv + y[:, k:k + t_out, col + k * NF:col + (k + 1) * NF]
            col += K * NF
            pooled.append(jnp.max(conv, axis=1))        # max_pool1d over time -> (NB, NF)

        pad = jnp.zeros((NB, FPAD - NF * len(KS)), jnp.float32)
        feat = jnp.concatenate(pooled + [pad], axis=1)  # (NB, FPAD), lane-dense

        # Bias add + ReLU hoisted after the time-max (monotone -> identical result).
        feat = jnp.maximum(feat + b_ref[...], 0.0)

        # Mask out padded sentence rows before the document sum.
        rows = (pl.program_id(0) * NB
                + jax.lax.broadcasted_iota(jnp.int32, (NB, FPAD), 0))
        feat = jnp.where(rows < n_true, feat, 0.0)

        # Partial document vector for this block; keep 8 sublanes for a full-tile store.
        out_ref[0] = feat.reshape(NB // 8, 8, FPAD).sum(axis=0)

    return kernel


def cnn_forward(x, params, block_rows=128):
    """x: (batch, sentences, words) int32 token ids."""
    batch, sentences, words = x.shape
    emb_table = params["embeddings"]                    # (vocab, E)
    E = emb_table.shape[1]
    N = batch * sentences
    NF = N_FILTERS
    n_feat = NF * len(KS)                               # 100

    # Block of sentences per grid step (multiple of 8, capped for VMEM headroom
    # on v7x's smaller VMEM; at words=16, E=32 this is tiny anyway).
    NB = max(8, min(_round_up(block_rows, 8), _round_up(N, 8)))
    N_pad = _round_up(N, NB)
    words_pad = _round_up(words, 8)                     # padded word rows are never read

    # --- embedding gather (glue, plain JAX); bf16 activations for the MXU ---
    # TODO(synk): the gather could be fused into the kernel via scalar-prefetched
    #             token ids + an Element row-gather index_map for large inputs.
    emb = jnp.take(emb_table, x.reshape(-1), axis=0).reshape(N, words, E)
    emb = emb.astype(jnp.bfloat16)
    emb = jnp.pad(emb, ((0, N_pad - N), (0, words_pad - words), (0, 0)))
    emb_flat = emb.reshape(N_pad * words_pad, E)

    # --- pack all conv taps into one lane-padded (E, WPAD) weight matrix ---
    w_cols, b_cols = [], []
    for K in KS:
        w = params[f"w{K}"]                             # (K, E, NF)
        w_cols.append(jnp.transpose(w, (1, 0, 2)).reshape(E, K * NF))
        b_cols.append(params[f"b{K}"].reshape(NF))
    w_all = jnp.concatenate(w_cols, axis=1)             # (E, 400)
    w_all = jnp.pad(w_all, ((0, 0), (0, WPAD - w_all.shape[1]))).astype(jnp.bfloat16)
    b_all = jnp.concatenate(b_cols)                     # (100,)
    b_all = jnp.pad(b_all, (0, FPAD - n_feat)).reshape(1, FPAD).astype(jnp.float32)

    n_blocks = N_pad // NB
    kern = make_cnn_kernel(NB, words, words_pad, N)

    partials = pl.pallas_call(
        kern,
        out_shape=jax.ShapeDtypeStruct((n_blocks, 8, FPAD), jnp.float32),
        grid_spec=pltpu.PrefetchScalarGridSpec(
            num_scalar_prefetch=0,
            grid=(n_blocks,),
            in_specs=[
                pl.BlockSpec((NB * words_pad, E), lambda n: (n, 0)),
                pl.BlockSpec((E, WPAD), lambda n: (0, 0)),
                pl.BlockSpec((1, FPAD), lambda n: (0, 0)),
            ],
            out_specs=pl.BlockSpec((1, 8, FPAD), lambda n: (n, 0, 0)),
        ),
        compiler_params=pltpu.CompilerParams(
            dimension_semantics=("parallel",)),          # blocks are independent partials
    )(emb_flat, w_all, b_all)

    # torch.sum(cnn_out, dim=0) + classifier Linear (tiny -> plain JAX epilogue).
    doc = jnp.sum(partials, axis=(0, 1))[:n_feat].reshape(1, n_feat)
    return doc @ params["wc"] + params["bc"]


def reference_forward(x, params):
    """Pure-JAX f32 reference mirroring the PyTorch forward."""
    batch, sentences, words = x.shape
    E = params["embeddings"].shape[1]
    emb = jnp.take(params["embeddings"], x.reshape(-1), axis=0)
    emb = emb.reshape(batch * sentences, words, E).astype(jnp.float32)
    feats = []
    for K in KS:
        w = params[f"w{K}"]                             # (K, E, NF)
        b = params[f"b{K}"]                             # (1, NF)
        t_out = words - K + 1
        conv = jnp.zeros((emb.shape[0], t_out, N_FILTERS), jnp.float32)
        for k in range(K):
            conv = conv + jnp.einsum("nte,ef->ntf", emb[:, k:k + t_out, :], w[k])
        conv = jnp.maximum(conv + b[None], 0.0)
        feats.append(jnp.max(conv, axis=1))             # (N, NF)
    feat = jnp.concatenate(feats, axis=1)               # (N, 100)
    doc = jnp.sum(feat, axis=0, keepdims=True)          # (1, 100)
    return doc @ params["wc"] + params["bc"]


def init_params(key, vocab_size, embedding_dim, n_classes):
    """Deterministic synthetic parameter init (shapes match CNN.__init__)."""
    n_feat = N_FILTERS * len(KS)
    keys = jax.random.split(key, 3 + len(KS))
    params = {
        "embeddings": jax.random.normal(keys[0], (vocab_size, embedding_dim),
                                        jnp.float32) * 0.1,
        # classifier: PyTorch Linear weight is (n_classes, n_feat); stored transposed.
        "wc": jax.random.normal(keys[1], (n_feat, n_classes), jnp.float32) * 0.1,
        "bc": jax.random.normal(keys[2], (1, n_classes), jnp.float32) * 0.1,
    }
    for i, K in enumerate(KS):
        kw, kb = jax.random.split(keys[3 + i])
        # PyTorch Conv2d weight is (NF, 1, K, E); stored as (K, E, NF) for matmul.
        params[f"w{K}"] = jax.random.normal(kw, (K, embedding_dim, N_FILTERS),
                                            jnp.float32) * 0.1
        params[f"b{K}"] = jax.random.normal(kb, (1, N_FILTERS), jnp.float32) * 0.1
    return params


if __name__ == "__main__":
    batch, sentences, words = 2, 3, 16
    vocab_size, embedding_dim, n_classes = 50, 32, 5

    key = jax.random.PRNGKey(0)
    k_param, k_x = jax.random.split(key)
    params = init_params(k_param, vocab_size, embedding_dim, n_classes)
    x = jax.random.randint(k_x, (batch, sentences, words), 0, vocab_size,
                           dtype=jnp.int32)

    out = jax.block_until_ready(cnn_forward(x, params))
    ref = reference_forward(x, params)

    assert out.shape == (1, n_classes)
    # Kernel uses bf16 activations/conv weights (f32 accumulation), so compare to
    # the pure-f32 reference with a correspondingly looser tolerance.
    assert jnp.allclose(out, ref, atol=2e-2, rtol=2e-2), (out, ref)

    print("KERNEL_OK")
</pallas_src>

<mosaic_0001>
module attributes {stable_mosaic.version = 11 : i64} {
  func.func @kernel(%arg0: i32, %arg1: memref<128x32xbf16, #tpu.memory_space<vmem>>, %arg2: memref<32x512xbf16, #tpu.memory_space<vmem>>, %arg3: memref<1x128xf32, #tpu.memory_space<vmem>>, %arg4: memref<1x8x128xf32, #tpu.memory_space<vmem>>) attributes {dimension_semantics = [#tpu.dimension_semantics<parallel>], iteration_bounds = array<i64: 1>, scalar_prefetch = 0 : i64, scratch_operands = 0 : i64, tpu.core_type = #tpu.core_type<tc>, window_params = [{transform_indices = @transform_0, window_bounds = array<i64: 128, 32>}, {pipeline_mode = #tpu.pipeline_mode<synchronous>, transform_indices = @transform_1, window_bounds = array<i64: 32, 512>}, {pipeline_mode = #tpu.pipeline_mode<synchronous>, transform_indices = @transform_2, window_bounds = array<i64: 1, 128>}, {transform_indices = @transform_3, window_bounds = array<i64: 1, 8, 128>}]} {
    %c0 = arith.constant 0 : index
    %c0_0 = arith.constant 0 : index
    %0 = vector.load %arg1[%c0, %c0_0] : memref<128x32xbf16, #tpu.memory_space<vmem>>, vector<128x32xbf16>
    %c0_1 = arith.constant 0 : index
    %c0_2 = arith.constant 0 : index
    %1 = vector.load %arg2[%c0_1, %c0_2] : memref<32x512xbf16, #tpu.memory_space<vmem>>, vector<32x512xbf16>
    %cst = arith.constant dense<0.000000e+00> : vector<128x512xf32>
    %2 = tpu.matmul %0, %1, %cst {dimension_numbers = #tpu.dot_dimension_numbers<[1], [0], [0], [1], [0, 0, 1, 1], [], []>} : vector<128x32xbf16>, vector<32x512xbf16>, vector<128x512xf32> -> vector<128x512xf32>
    %3 = vector.shape_cast %2 : vector<128x512xf32> to vector<8x16x512xf32>
    %4 = vector.extract_strided_slice %3 {offsets = [0, 0, 0], sizes = [8, 15, 20], strides = [1, 1, 1]} : vector<8x16x512xf32> to vector<8x15x20xf32>
    %5 = vector.extract_strided_slice %3 {offsets = [0, 1, 20], sizes = [8, 15, 20], strides = [1, 1, 1]} : vector<8x16x512xf32> to vector<8x15x20xf32>
    %6 = arith.addf %4, %5 : vector<8x15x20xf32>
    %cst_3 = arith.constant dense<0xFF800000> : vector<8x20xf32>
    %7 = vector.multi_reduction <maximumf>, %6, %cst_3 [1] : vector<8x15x20xf32> to vector<8x20xf32>
    %8 = vector.extract_strided_slice %3 {offsets = [0, 0, 40], sizes = [8, 14, 20], strides = [1, 1, 1]} : vector<8x16x512xf32> to vector<8x14x20xf32>
    %9 = vector.extract_strided_slice %3 {offsets = [0, 1, 60], sizes = [8, 14, 20], strides = [1, 1, 1]} : vector<8x16x512xf32> to vector<8x14x20xf32>
    %10 = arith.addf %8, %9 : vector<8x14x20xf32>
    %11 = vector.extract_strided_slice %3 {offsets = [0, 2, 80], sizes = [8, 14, 20], strides = [1, 1, 1]} : vector<8x16x512xf32> to vector<8x14x20xf32>
    %12 = arith.addf %10, %11 : vector<8x14x20xf32>
    %cst_4 = arith.constant dense<0xFF800000> : vector<8x20xf32>
    %13 = vector.multi_reduction <maximumf>, %12, %cst_4 [1] : vector<8x14x20xf32> to vector<8x20xf32>
    %14 = vector.extract_strided_slice %3 {offsets = [0, 0, 100], sizes = [8, 13, 20], strides = [1, 1, 1]} : vector<8x16x512xf32> to vector<8x13x20xf32>
    %15 = vector.extract_strided_slice %3 {offsets = [0, 1, 120], sizes = [8, 13, 20], strides = [1, 1, 1]} : vector<8x16x512xf32> to vector<8x13x20xf32>
    %16 = arith.addf %14, %15 : vector<8x13x20xf32>
    %17 = vector.extract_strided_slice %3 {offsets = [0, 2, 140], sizes = [8, 13, 20], strides = [1, 1, 1]} : vector<8x16x512xf32> to vector<8x13x20xf32>
    %18 = arith.addf %16, %17 : vector<8x13x20xf32>
    %19 = vector.extract_strided_slice %3 {offsets = [0, 3, 160], sizes = [8, 13, 20], strides = [1, 1, 1]} : vector<8x16x512xf32> to vector<8x13x20xf32>
    %20 = arith.addf %18, %19 : vector<8x13x20xf32>
    %cst_5 = arith.constant dense<0xFF800000> : vector<8x20xf32>
    %21 = vector.multi_reduction <maximumf>, %20, %cst_5 [1] : vector<8x13x20xf32> to vector<8x20xf32>
    %22 = vector.extract_strided_slice %3 {offsets = [0, 0, 180], sizes = [8, 12, 20], strides = [1, 1, 1]} : vector<8x16x512xf32> to vector<8x12x20xf32>
    %23 = vector.extract_strided_slice %3 {offsets = [0, 1, 200], sizes = [8, 12, 20], strides = [1, 1, 1]} : vector<8x16x512xf32> to vector<8x12x20xf32>
    %24 = arith.addf %22, %23 : vector<8x12x20xf32>
    %25 = vector.extract_strided_slice %3 {offsets = [0, 2, 220], sizes = [8, 12, 20], strides = [1, 1, 1]} : vector<8x16x512xf32> to vector<8x12x20xf32>
    %26 = arith.addf %24, %25 : vector<8x12x20xf32>
    %27 = vector.extract_strided_slice %3 {offsets = [0, 3, 240], sizes = [8, 12, 20], strides = [1, 1, 1]} : vector<8x16x512xf32> to vector<8x12x20xf32>
    %28 = arith.addf %26, %27 : vector<8x12x20xf32>
    %29 = vector.extract_strided_slice %3 {offsets = [0, 4, 260], sizes = [8, 12, 20], strides = [1, 1, 1]} : vector<8x16x512xf32> to vector<8x12x20xf32>
    %30 = arith.addf %28, %29 : vector<8x12x20xf32>
    %cst_6 = arith.constant dense<0xFF800000> : vector<8x20xf32>
    %31 = vector.multi_reduction <maximumf>, %30, %cst_6 [1] : vector<8x12x20xf32> to vector<8x20xf32>
    %32 = vector.extract_strided_slice %3 {offsets = [0, 0, 280], sizes = [8, 11, 20], strides = [1, 1, 1]} : vector<8x16x512xf32> to vector<8x11x20xf32>
    %33 = vector.extract_strided_slice %3 {offsets = [0, 1, 300], sizes = [8, 11, 20], strides = [1, 1, 1]} : vector<8x16x512xf32> to vector<8x11x20xf32>
    %34 = arith.addf %32, %33 : vector<8x11x20xf32>
    %35 = vector.extract_strided_slice %3 {offsets = [0, 2, 320], sizes = [8, 11, 20], strides = [1, 1, 1]} : vector<8x16x512xf32> to vector<8x11x20xf32>
    %36 = arith.addf %34, %35 : vector<8x11x20xf32>
    %37 = vector.extract_strided_slice %3 {offsets = [0, 3, 340], sizes = [8, 11, 20], strides = [1, 1, 1]} : vector<8x16x512xf32> to vector<8x11x20xf32>
    %38 = arith.addf %36, %37 : vector<8x11x20xf32>
    %39 = vector.extract_strided_slice %3 {offsets = [0, 4, 360], sizes = [8, 11, 20], strides = [1, 1, 1]} : vector<8x16x512xf32> to vector<8x11x20xf32>
    %40 = arith.addf %38, %39 : vector<8x11x20xf32>
    %41 = vector.extract_strided_slice %3 {offsets = [0, 5, 380], sizes = [8, 11, 20], strides = [1, 1, 1]} : vector<8x16x512xf32> to vector<8x11x20xf32>
    %42 = arith.addf %40, %41 : vector<8x11x20xf32>
    %cst_7 = arith.constant dense<0xFF800000> : vector<8x20xf32>
    %43 = vector.multi_reduction <maximumf>, %42, %cst_7 [1] : vector<8x11x20xf32> to vector<8x20xf32>
    %cst_8 = arith.constant 0.000000e+00 : f32
    %44 = vector.broadcast %cst_8 : f32 to vector<8x28xf32>
    %45 = tpu.concatenate %7, %13, %21, %31, %43, %44 in 1 : vector<8x20xf32>, vector<8x20xf32>, vector<8x20xf32>, vector<8x20xf32>, vector<8x20xf32>, vector<8x28xf32> -> vector<8x128xf32>
    %c0_9 = arith.constant 0 : index
    %c0_10 = arith.constant 0 : index
    %46 = vector.load %arg3[%c0_9, %c0_10] : memref<1x128xf32, #tpu.memory_space<vmem>>, vector<1x128xf32>
    %47 = vector.broadcast %46 : vector<1x128xf32> to vector<8x128xf32>
    %48 = arith.addf %45, %47 : vector<8x128xf32>
    %cst_11 = arith.constant 0.000000e+00 : f32
    %49 = vector.broadcast %cst_11 : f32 to vector<8x128xf32>
    %50 = arith.maximumf %48, %49 : vector<8x128xf32>
    %c8_i32 = arith.constant 8 : i32
    %51 = arith.muli %arg0, %c8_i32 : i32
    %52 = tpu.iota {dimensions = array<i32: 0>} : vector<8x128xi32>
    %53 = vector.broadcast %51 : i32 to vector<8x128xi32>
    %54 = arith.addi %53, %52 : vector<8x128xi32>
    %c6_i32 = arith.constant 6 : i32
    %55 = vector.broadcast %c6_i32 : i32 to vector<8x128xi32>
    %56 = arith.cmpi slt, %54, %55 : vector<8x128xi32>
    %cst_12 = arith.constant 0.000000e+00 : f32
    %57 = vector.broadcast %cst_12 : f32 to vector<8x128xf32>
    %58 = arith.select %56, %50, %57 : vector<8x128xi1>, vector<8x128xf32>
    %59 = vector.shape_cast %58 : vector<8x128xf32> to vector<1x8x128xf32>
    %cst_13 = arith.constant dense<0.000000e+00> : vector<8x128xf32>
    %60 = vector.multi_reduction <add>, %59, %cst_13 [0] : vector<1x8x128xf32> to vector<8x128xf32>
    %c0_14 = arith.constant 0 : index
    %c0_15 = arith.constant 0 : index
    %c0_16 = arith.constant 0 : index
    %61 = vector.load %arg4[%c0_14, %c0_15, %c0_16] : memref<1x8x128xf32, #tpu.memory_space<vmem>>, vector<1x8x128xf32>
    %62 = vector.shape_cast %61 : vector<1x8x128xf32> to vector<8x128xf32>
    %63 = vector.shape_cast %60 : vector<8x128xf32> to vector<1x8x128xf32>
    tpu.vector_store %arg4[%c0_14, %c0_15, %c0_16], %63 {strides = array<i32>} : memref<1x8x128xf32, #tpu.memory_space<vmem>>, vector<1x8x128xf32>,
    return
  }
  func.func @transform_0(%arg0: i32) -> (i32, i32) {
    %c0_i32 = arith.constant 0 : i32
    %c0_i32_0 = arith.constant 0 : i32
    return %arg0, %c0_i32 : i32, i32
  }
  func.func @transform_1(%arg0: i32) -> (i32, i32) {
    %c0_i32 = arith.constant 0 : i32
    %c0_i32_0 = arith.constant 0 : i32
    %c0_i32_1 = arith.constant 0 : i32
    return %c0_i32, %c0_i32_0 : i32, i32
  }
  func.func @transform_2(%arg0: i32) -> (i32, i32) {
    %c0_i32 = arith.constant 0 : i32
    %c0_i32_0 = arith.constant 0 : i32
    %c0_i32_1 = arith.constant 0 : i32
    return %c0_i32, %c0_i32_0 : i32, i32
  }
  func.func @transform_3(%arg0: i32) -> (i32, i32, i32) {
    %c0_i32 = arith.constant 0 : i32
    %c0_i32_0 = arith.constant 0 : i32
    %c0_i32_1 = arith.constant 0 : i32
    return %arg0, %c0_i32, %c0_i32_0 : i32, i32, i32
  }
}

</mosaic_0001>

<llo_original>
// kernel: tpu_custom_call.1
$region0: #{tpu_custom_call.1}
  #allocation0 [shape = 'u32[]', space=smem, size = 0x4, offset = 0x4, fixed_abs, tag = 'smem constant byte address 0x4 - core index']
  #allocation1 [shape = 'u32[144,128]{1,0:T(1,128)}', space=vmem, size = 0x12000, scoped, tag = 'internal scratch']
  %s0 = inlined_call_operand.vmem [shape: bf16[128,32], index: 0, kind: input, shape index: {}]
  %s1 = inlined_call_operand.vmem [shape: bf16[32,512], index: 1, kind: input, shape index: {}]
  %s2 = inlined_call_operand.vmem [shape: f32[1,128], index: 2, kind: input, shape index: {}]
  %s3 = inlined_call_operand.hbm [shape: f32[1,8,128], index: 3, kind: output, shape index: {}]
  %s4 = sld [smem:[#allocation0]]
  $region22: #{tpu_custom_call.1} parent=0
    _
  %s6 = ssub.s32 1, %s4
  %s7 = scalar_select 0, %s6, %s4
  $region1: #{tpu_custom_call.1} parent=0
    #allocation2 [shape = 'u8[4096]{0}', space=vmem, size = 0x1000, scoped, tag = 'output window, operand 0, single buffered']
    #allocation3 [shape = 's32[1]{0}', space=sflag, size = 0x4, scoped, tag = 'scoped memory for tpu_custom_call.1']
    %8 = vsyncpa [#allocation3], 0
    // Predicated region
    $region2: #{tpu_custom_call.1} parent=1 // pred_check
      _
    $region3: #{tpu_custom_call.1} parent=1 // pred_check_branch
      %10 = sbr.rel (0) target = $region5
    $region4: #{tpu_custom_call.1} parent=1 // pred_region
      _
    $region5: #{tpu_custom_call.1} parent=1 // pred_fallthru
      _
    // Predicated region
    $region6: #{tpu_custom_call.1} parent=1 // pred_check
      _
    $region7: #{tpu_custom_call.1} parent=1 // pred_check_branch
      %12 = sbr.rel (0) target = $region9
    $region8: #{tpu_custom_call.1} parent=1 // pred_region
      _
    $region9: #{tpu_custom_call.1} parent=1 // pred_fallthru
      _
    // Predicated region
    $region10: #{tpu_custom_call.1} parent=1 // pred_check
      _
    $region11: #{tpu_custom_call.1} parent=1 // pred_check_branch
      %14 = sbr.rel (0) target = $region13
    $region12: #{tpu_custom_call.1} parent=1 // pred_region
      _
    $region13: #{tpu_custom_call.1} parent=1 // pred_fallthru
      _
    %v16 = vld [vmem:[%s0] sm:$0xf]
    %v17 = vld [vmem:[%s0 + $0x4] sm:$0xf]
    %v18 = vld [vmem:[%s0 + $0x8] sm:$0xf]
    %v19 = vld [vmem:[%s0 + $0xc] sm:$0xf]
    %v20 = vld [vmem:[%s0 + $0x10] sm:$0xf]
    %v21 = vld [vmem:[%s0 + $0x14] sm:$0xf]
    %v22 = vld [vmem:[%s0 + $0x18] sm:$0xf]
    %v23 = vld [vmem:[%s0 + $0x1c] sm:$0xf]
    %v24 = vld [vmem:[%s0 + $0x20] sm:$0xf]
    %v25 = vld [vmem:[%s0 + $0x24] sm:$0xf]
    %v26 = vld [vmem:[%s0 + $0x28] sm:$0xf]
    %v27 = vld [vmem:[%s0 + $0x2c] sm:$0xf]
    %v28 = vld [vmem:[%s0 + $0x30] sm:$0xf]
    %v29 = vld [vmem:[%s0 + $0x34] sm:$0xf]
    %v30 = vld [vmem:[%s0 + $0x38] sm:$0xf]
    %v31 = vld [vmem:[%s0 + $0x3c] sm:$0xf]
    %v32 = vld [vmem:[%s1] sm:$0xff]
    %v33 = vld [vmem:[%s1 + $0x8] sm:$0xff]
    %v34 = vld [vmem:[%s1 + $0x10] sm:$0xff]
    %v35 = vld [vmem:[%s1 + $0x18] sm:$0xff]
    %v36 = vld [vmem:[%s1 + $0x20] sm:$0xff]
    %v37 = vld [vmem:[%s1 + $0x28] sm:$0xff]
    %v38 = vld [vmem:[%s1 + $0x30] sm:$0xff]
    %v39 = vld [vmem:[%s1 + $0x38] sm:$0xff]
    %v56 = vunpack.c.l.b16 %v16
    %v57 = vunpack.c.l.b16 %v17
    %v58 = vunpack.c.l.b16 %v18
    %v59 = vunpack.c.l.b16 %v19
    %v60 = vunpack.c.l.b16 %v20
    %v61 = vunpack.c.l.b16 %v21
    %v62 = vunpack.c.l.b16 %v22
    %v63 = vunpack.c.l.b16 %v23
    %v64 = vunpack.c.l.b16 %v24
    %v65 = vunpack.c.l.b16 %v25
    %v66 = vunpack.c.l.b16 %v26
    %v67 = vunpack.c.l.b16 %v27
    %v68 = vunpack.c.l.b16 %v28
    %v69 = vunpack.c.l.b16 %v29
    %v70 = vunpack.c.l.b16 %v30
    %v71 = vunpack.c.l.b16 %v31
    %v72 = vpack.c.b16 %v57, %v56
    %v73 = vpack.c.b16 %v59, %v58
    %v74 = vpack.c.b16 %v61, %v60
    %v75 = vpack.c.b16 %v63, %v62
    %v76 = vpack.c.b16 %v65, %v64
    %v77 = vpack.c.b16 %v67, %v66
    %v78 = vpack.c.b16 %v69, %v68
    %v79 = vpack.c.b16 %v71, %v70
    %v88 = vunpack.c.l.b16 %v32
    %v89 = vunpack.c.h.b16 %v32
    %v90 = vunpack.c.l.b16 %v33
    %v91 = vunpack.c.h.b16 %v33
    %v92 = vunpack.c.l.b16 %v34
    %v93 = vunpack.c.h.b16 %v34
    %v94 = vunpack.c.l.b16 %v35
    %v95 = vunpack.c.h.b16 %v35
    %v96 = vunpack.c.l.b16 %v36
    %v97 = vunpack.c.h.b16 %v36
    %v98 = vunpack.c.l.b16 %v37
    %v99 = vunpack.c.h.b16 %v37
    %v100 = vunpack.c.l.b16 %v38
    %v101 = vunpack.c.h.b16 %v38
    %v102 = vunpack.c.l.b16 %v39
    %v103 = vunpack.c.h.b16 %v39
    %v104 = vpack.c.b16 %v92, %v88
    %v105 = vpack.c.b16 %v93, %v89
    %v106 = vpack.c.b16 %v94, %v90
    %v107 = vpack.c.b16 %v95, %v91
    %v108 = vpack.c.b16 %v100, %v96
    %v109 = vpack.c.b16 %v101, %v97
    %v110 = vpack.c.b16 %v102, %v98
    %v111 = vpack.c.b16 %v103, %v99
    %vm120 = vcmask 261120
    %v122 = vsel %vm120, %v72, 0
    %v125 = vsel %vm120, %v73, 0
    %v128 = vsel %vm120, %v74, 0
    %v131 = vsel %vm120, %v75, 0
    %v134 = vsel %vm120, %v76, 0
    %v137 = vsel %vm120, %v77, 0
    %v140 = vsel %vm120, %v78, 0
    %v143 = vsel %vm120, %v79, 0
    %145 = vmatprep.subr.bf16.mxu0 %v105
    %146 = vmatpush1.bf16.msra.mxu0 %v104
    %147 = vmatprep.subr.bf16.mxu0 %v109
    %148 = vmatpush1.bf16.msra.mxu0 %v108
    %149 = vmatprep.subr.bf16.mxu0 0
    %150 = vmatpush1.bf16.msra.mxu0 0
    %151 = vmatprep.subr.bf16.mxu0 0
    %152 = vmatpush1.bf16.msra.mxu0 0
    %153 = vmatprep.subr.bf16.mxu0 0
    %154 = vmatpush1.bf16.msra.mxu0 0
    %155 = vmatprep.subr.bf16.mxu0 0
    %156 = vmatpush1.bf16.msra.mxu0 0
    %157 = vmatprep.subr.bf16.mxu0 0
    %158 = vmatpush1.bf16.msra.mxu0 0
    %159 = vmatprep.subr.bf16.mxu0 0
    %160 = vmatpush1.bf16.msra.mxu0 0
    %161 = vmatprep.subr.bf16.mxu0 0
    %162 = vmatpush1.bf16.msra.mxu0 0
    %163 = vmatprep.subr.bf16.mxu0 0
    %164 = vmatpush1.bf16.msra.mxu0 0
    %165 = vmatprep.subr.bf16.mxu0 0
    %166 = vmatpush1.bf16.msra.mxu0 0
    %167 = vmatprep.subr.bf16.mxu0 0
    %168 = vmatpush1.bf16.msra.mxu0 0
    %169 = vmatprep.subr.bf16.mxu0 0
    %170 = vmatpush1.bf16.msra.mxu0 0
    %171 = vmatprep.subr.bf16.mxu0 0
    %172 = vmatpush1.bf16.msra.mxu0 0
    %173 = vmatprep.subr.bf16.mxu0 0
    %174 = vmatpush1.bf16.msra.mxu0 0
    %175 = vmatprep.subr.bf16.mxu0 0
    %176 = vmatpush1.bf16.msra.mxu0 0
    %177 = vmatprep.mubr.bf16.mxu0 0
    %178 = vmatmul.mubr.bf16.gmra.mrb[0].mxu0 %v122
    %v179 = vpop.f32.mrb[0].mxu0
    %v180 = vadd.f32 0.0, %v179
    %v181 = vpop.f32.mrb[0].mxu0
    %v182 = vadd.f32 0.0, %v181
    %v183 = vpop.f32.mrb[0].mxu0
    %v184 = vadd.f32 0.0, %v183
    %v185 = vpop.f32.mrb[0].mxu0
    %v186 = vadd.f32 0.0, %v185
    %187 = vmatprep.mubr.bf16.mxu0 0
    %188 = vmatmul.mubr.bf16.gmra.mrb[0].mxu0 %v125
    %v189 = vpop.f32.mrb[0].mxu0
    %v190 = vadd.f32 0.0, %v189
    %v191 = vpop.f32.mrb[0].mxu0
    %v192 = vadd.f32 0.0, %v191
    %v193 = vpop.f32.mrb[0].mxu0
    %v194 = vadd.f32 0.0, %v193
    %v195 = vpop.f32.mrb[0].mxu0
    %v196 = vadd.f32 0.0, %v195
    %197 = vmatprep.mubr.bf16.mxu0 0
    %198 = vmatmul.mubr.bf16.gmra.mrb[0].mxu0 %v128
    %v199 = vpop.f32.mrb[0].mxu0
    %v200 = vadd.f32 0.0, %v199
    %v201 = vpop.f32.mrb[0].mxu0
    %v202 = vadd.f32 0.0, %v201
    %v203 = vpop.f32.mrb[0].mxu0
    %v204 = vadd.f32 0.0, %v203
    %v205 = vpop.f32.mrb[0].mxu0
    %v206 = vadd.f32 0.0, %v205
    %207 = vmatprep.mubr.bf16.mxu0 0
    %208 = vmatmul.mubr.bf16.gmra.mrb[0].mxu0 %v131
    %v209 = vpop.f32.mrb[0].mxu0
    %v210 = vadd.f32 0.0, %v209
    %v211 = vpop.f32.mrb[0].mxu0
    %v212 = vadd.f32 0.0, %v211
    %v213 = vpop.f32.mrb[0].mxu0
    %v214 = vadd.f32 0.0, %v213
    %v215 = vpop.f32.mrb[0].mxu0
    %v216 = vadd.f32 0.0, %v215
    %217 = vmatprep.mubr.bf16.mxu0 0
    %218 = vmatmul.mubr.bf16.gmra.mrb[0].mxu0 %v134
    %v219 = vpop.f32.mrb[0].mxu0
    %v220 = vadd.f32 0.0, %v219
    %v221 = vpop.f32.mrb[0].mxu0
    %v222 = vadd.f32 0.0, %v221
    %v223 = vpop.f32.mrb[0].mxu0
    %v224 = vadd.f32 0.0, %v223
    %v225 = vpop.f32.mrb[0].mxu0
    %v226 = vadd.f32 0.0, %v225
    %227 = vmatprep.mubr.bf16.mxu0 0
    %228 = vmatmul.mubr.bf16.gmra.mrb[0].mxu0 %v137
    %v229 = vpop.f32.mrb[0].mxu0
    %v230 = vadd.f32 0.0, %v229
    %v231 = vpop.f32.mrb[0].mxu0
    %v232 = vadd.f32 0.0, %v231
    %v233 = vpop.f32.mrb[0].mxu0
    %v234 = vadd.f32 0.0, %v233
    %v235 = vpop.f32.mrb[0].mxu0
    %v236 = vadd.f32 0.0, %v235
    %237 = vmatprep.mubr.bf16.mxu0 0
    %238 = vmatmul.mubr.bf16.gmra.mrb[0].mxu0 %v140
    %v239 = vpop.f32.mrb[0].mxu0
    %v240 = vadd.f32 0.0, %v239
    %v241 = vpop.f32.mrb[0].mxu0
    %v242 = vadd.f32 0.0, %v241
    %v243 = vpop.f32.mrb[0].mxu0
    %v244 = vadd.f32 0.0, %v243
    %v245 = vpop.f32.mrb[0].mxu0
    %v246 = vadd.f32 0.0, %v245
    %247 = vmatprep.mubr.bf16.mxu0 0
    %248 = vmatmul.mubr.bf16.gmra.mrb[0].mxu0 %v143
    %v249 = vpop.f32.mrb[0].mxu0
    %v250 = vadd.f32 0.0, %v249
    %v251 = vpop.f32.mrb[0].mxu0
    %v252 = vadd.f32 0.0, %v251
    %v253 = vpop.f32.mrb[0].mxu0
    %v254 = vadd.f32 0.0, %v253
    %v255 = vpop.f32.mrb[0].mxu0
    %v256 = vadd.f32 0.0, %v255
    %257 = vdwg.mxu0
    %258 = vmatprep.subr.bf16.mxu0 %v107
    %259 = vmatpush1.bf16.msra.mxu0 %v106
    %260 = vmatprep.subr.bf16.mxu0 %v111
    %261 = vmatpush1.bf16.msra.mxu0 %v110
    %262 = vmatprep.subr.bf16.mxu0 0
    %263 = vmatpush1.bf16.msra.mxu0 0
    %264 = vmatprep.subr.bf16.mxu0 0
    %265 = vmatpush1.bf16.msra.mxu0 0
    %266 = vmatprep.subr.bf16.mxu0 0
    %267 = vmatpush1.bf16.msra.mxu0 0
    %268 = vmatprep.subr.bf16.mxu0 0
    %269 = vmatpush1.bf16.msra.mxu0 0
    %270 = vmatprep.subr.bf16.mxu0 0
    %271 = vmatpush1.bf16.msra.mxu0 0
    %272 = vmatprep.subr.bf16.mxu0 0
    %273 = vmatpush1.bf16.msra.mxu0 0
    %274 = vmatprep.subr.bf16.mxu0 0
    %275 = vmatpush1.bf16.msra.mxu0 0
    %276 = vmatprep.subr.bf16.mxu0 0
    %277 = vmatpush1.bf16.msra.mxu0 0
    %278 = vmatprep.subr.bf16.mxu0 0
    %279 = vmatpush1.bf16.msra.mxu0 0
    %280 = vmatprep.subr.bf16.mxu0 0
    %281 = vmatpush1.bf16.msra.mxu0 0
    %282 = vmatprep.subr.bf16.mxu0 0
    %283 = vmatpush1.bf16.msra.mxu0 0
    %284 = vmatprep.subr.bf16.mxu0 0
    %285 = vmatpush1.bf16.msra.mxu0 0
    %286 = vmatprep.subr.bf16.mxu0 0
    %287 = vmatpush1.bf16.msra.mxu0 0
    %288 = vmatprep.subr.bf16.mxu0 0
    %289 = vmatpush1.bf16.msra.mxu0 0
    %290 = vmatprep.mubr.bf16.mxu0 0
    %291 = vmatmul.mubr.bf16.gmra.mrb[0].mxu0 %v122
    %v292 = vpop.f32.mrb[0].mxu0
    %v293 = vadd.f32 0.0, %v292
    %v294 = vpop.f32.mrb[0].mxu0
    %v295 = vadd.f32 0.0, %v294
    %v296 = vpop.f32.mrb[0].mxu0
    %v297 = vadd.f32 0.0, %v296
    %v298 = vpop.f32.mrb[0].mxu0
    %v299 = vadd.f32 0.0, %v298
    %300 = vmatprep.mubr.bf16.mxu0 0
    %301 = vmatmul.mubr.bf16.gmra.mrb[0].mxu0 %v125
    %v302 = vpop.f32.mrb[0].mxu0
    %v303 = vadd.f32 0.0, %v302
    %v304 = vpop.f32.mrb[0].mxu0
    %v305 = vadd.f32 0.0, %v304
    %v306 = vpop.f32.mrb[0].mxu0
    %v307 = vadd.f32 0.0, %v306
    %v308 = vpop.f32.mrb[0].mxu0
    %v309 = vadd.f32 0.0, %v308
    %310 = vmatprep.mubr.bf16.mxu0 0
    %311 = vmatmul.mubr.bf16.gmra.mrb[0].mxu0 %v128
    %v312 = vpop.f32.mrb[0].mxu0
    %v313 = vadd.f32 0.0, %v312
    %v314 = vpop.f32.mrb[0].mxu0
    %v315 = vadd.f32 0.0, %v314
    %v316 = vpop.f32.mrb[0].mxu0
    %v317 = vadd.f32 0.0, %v316
    %v318 = vpop.f32.mrb[0].mxu0
    %v319 = vadd.f32 0.0, %v318
    %320 = vmatprep.mubr.bf16.mxu0 0
    %321 = vmatmul.mubr.bf16.gmra.mrb[0].mxu0 %v131
    %v322 = vpop.f32.mrb[0].mxu0
    %v323 = vadd.f32 0.0, %v322
    %v324 = vpop.f32.mrb[0].mxu0
    %v325 = vadd.f32 0.0, %v324
    %v326 = vpop.f32.mrb[0].mxu0
    %v327 = vadd.f32 0.0, %v326
    %v328 = vpop.f32.mrb[0].mxu0
    %v329 = vadd.f32 0.0, %v328
    %330 = vmatprep.mubr.bf16.mxu0 0
    %331 = vmatmul.mubr.bf16.gmra.mrb[0].mxu0 %v134
    %v332 = vpop.f32.mrb[0].mxu0
    %v333 = vadd.f32 0.0, %v332
    %v334 = vpop.f32.mrb[0].mxu0
    %v335 = vadd.f32 0.0, %v334
    %v336 = vpop.f32.mrb[0].mxu0
    %v337 = vadd.f32 0.0, %v336
    %v338 = vpop.f32.mrb[0].mxu0
    %v339 = vadd.f32 0.0, %v338
    %340 = vmatprep.mubr.bf16.mxu0 0
    %341 = vmatmul.mubr.bf16.gmra.mrb[0].mxu0 %v137
    %v342 = vpop.f32.mrb[0].mxu0
    %v343 = vadd.f32 0.0, %v342
    %v344 = vpop.f32.mrb[0].mxu0
    %v345 = vadd.f32 0.0, %v344
    %v346 = vpop.f32.mrb[0].mxu0
    %v347 = vadd.f32 0.0, %v346
    %v348 = vpop.f32.mrb[0].mxu0
    %v349 = vadd.f32 0.0, %v348
    %350 = vmatprep.mubr.bf16.mxu0 0
    %351 = vmatmul.mubr.bf16.gmra.mrb[0].mxu0 %v140
    %v352 = vpop.f32.mrb[0].mxu0
    %v353 = vadd.f32 0.0, %v352
    %v354 = vpop.f32.mrb[0].mxu0
    %v355 = vadd.f32 0.0, %v354
    %v356 = vpop.f32.mrb[0].mxu0
    %v357 = vadd.f32 0.0, %v356
    %v358 = vpop.f32.mrb[0].mxu0
    %v359 = vadd.f32 0.0, %v358
    %360 = vmatprep.mubr.bf16.mxu0 0
    %361 = vmatmul.mubr.bf16.gmra.mrb[0].mxu0 %v143
    %v362 = vpop.f32.mrb[0].mxu0
    %v363 = vadd.f32 0.0, %v362
    %v364 = vpop.f32.mrb[0].mxu0
    %v365 = vadd.f32 0.0, %v364
    %v366 = vpop.f32.mrb[0].mxu0
    %v367 = vadd.f32 0.0, %v366
    %v368 = vpop.f32.mrb[0].mxu0
    %v369 = vadd.f32 0.0, %v368
    %370 = vdwg.mxu0
    %vm387 = vcmask 1046528
    %v388 = vrot.slane %v180, 1
    %v389 = vrot.slane %v184, 1
    %v390 = vsel %vm387, %v388, %v389
    %v391 = vrot.slane %v190, 1
    %v392 = vrot.slane %v194, 1
    %v393 = vsel %vm387, %v391, %v392
    %v394 = vrot.slane %v200, 1
    %v395 = vrot.slane %v204, 1
    %v396 = vsel %vm387, %v394, %v395
    %v397 = vrot.slane %v210, 1
    %v398 = vrot.slane %v214, 1
    %v399 = vsel %vm387, %v397, %v398
    %v400 = vrot.slane %v220, 1
    %v401 = vrot.slane %v224, 1
    %v402 = vsel %vm387, %v400, %v401
    %v403 = vrot.slane %v230, 1
    %v404 = vrot.slane %v234, 1
    %v405 = vsel %vm387, %v403, %v404
    %v406 = vrot.slane %v240, 1
    %v407 = vrot.slane %v244, 1
    %v408 = vsel %vm387, %v406, %v407
    %v409 = vrot.slane %v250, 1
    %v410 = vrot.slane %v254, 1
    %v411 = vsel %vm387, %v409, %v410
    %412 = vrot.lane.b32.xlu0 %v390, 108
    %v413 = vpop.permute.xlu0 %412
    %414 = vrot.lane.b32.xlu0 %v389, 108
    %v415 = vpop.permute.xlu0 %414
    %416 = vrot.lane.b32.xlu0 %v393, 108
    %v417 = vpop.permute.xlu0 %416
    %418 = vrot.lane.b32.xlu0 %v392, 108
    %v419 = vpop.permute.xlu0 %418
    %420 = vrot.lane.b32.xlu0 %v396, 108
    %v421 = vpop.permute.xlu0 %420
    %422 = vrot.lane.b32.xlu0 %v395, 108
    %v423 = vpop.permute.xlu0 %422
    %424 = vrot.lane.b32.xlu0 %v399, 108
    %v425 = vpop.permute.xlu0 %424
    %426 = vrot.lane.b32.xlu0 %v398, 108
    %v427 = vpop.permute.xlu0 %426
    %428 = vrot.lane.b32.xlu0 %v402, 108
    %v429 = vpop.permute.xlu0 %428
    %430 = vrot.lane.b32.xlu0 %v401, 108
    %v431 = vpop.permute.xlu0 %430
    %432 = vrot.lane.b32.xlu0 %v405, 108
    %v433 = vpop.permute.xlu0 %432
    %434 = vrot.lane.b32.xlu0 %v404, 108
    %v435 = vpop.permute.xlu0 %434
    %436 = vrot.lane.b32.xlu0 %v408, 108
    %v437 = vpop.permute.xlu0 %436
    %438 = vrot.lane.b32.xlu0 %v407, 108
    %v439 = vpop.permute.xlu0 %438
    %440 = vrot.lane.b32.xlu0 %v411, 108
    %v441 = vpop.permute.xlu0 %440
    %442 = vrot.lane.b32.xlu0 %v410, 108
    %v443 = vpop.permute.xlu0 %442
    %v460 = vadd.f32 %v180, %v413
    %v461 = vadd.f32 %v184, %v415
    %v462 = vadd.f32 %v190, %v417
    %v463 = vadd.f32 %v194, %v419
    %v464 = vadd.f32 %v200, %v421
    %v465 = vadd.f32 %v204, %v423
    %v466 = vadd.f32 %v210, %v425
    %v467 = vadd.f32 %v214, %v427
    %v468 = vadd.f32 %v220, %v429
    %v469 = vadd.f32 %v224, %v431
    %v470 = vadd.f32 %v230, %v433
    %v471 = vadd.f32 %v234, %v435
    %v472 = vadd.f32 %v240, %v437
    %v473 = vadd.f32 %v244, %v439
    %v474 = vadd.f32 %v250, %v441
    %v475 = vadd.f32 %v254, %v443
    %vm476 = vcmask 162816
    %v477 = vsel %vm476, %v460, -inf
    %vm478 = vcmask 161792
    %v479 = vsel %vm478, %v461, -inf
    %v480 = vmax.f32 %v477, %v479
    %v481 = vrot.slane %v480, 4
    %v482 = vmax.f32 %v480, %v481
    %v483 = vrot.slane %v482, 2
    %v484 = vmax.f32 %v482, %v483
    %v485 = vrot.slane %v484, 1
    %v486 = vmax.f32 %v484, %v485
    %v487 = vsel %vm476, %v462, -inf
    %v488 = vsel %vm478, %v463, -inf
    %v489 = vmax.f32 %v487, %v488
    %v490 = vrot.slane %v489, 4
    %v491 = vmax.f32 %v489, %v490
    %v492 = vrot.slane %v491, 2
    %v493 = vmax.f32 %v491, %v492
    %v494 = vrot.slane %v493, 1
    %v495 = vmax.f32 %v493, %v494
    %v496 = vsel %vm476, %v464, -inf
    %v497 = vsel %vm478, %v465, -inf
    %v498 = vmax.f32 %v496, %v497
    %v499 = vrot.slane %v498, 4
    %v500 = vmax.f32 %v498, %v499
    %v501 = vrot.slane %v500, 2
    %v502 = vmax.f32 %v500, %v501
    %v503 = vrot.slane %v502, 1
    %v504 = vmax.f32 %v502, %v503
    %v505 = vsel %vm476, %v466, -inf
    %v506 = vsel %vm478, %v467, -inf
    %v507 = vmax.f32 %v505, %v506
    %v508 = vrot.slane %v507, 4
    %v509 = vmax.f32 %v507, %v508
    %v510 = vrot.slane %v509, 2
    %v511 = vmax.f32 %v509, %v510
    %v512 = vrot.slane %v511, 1
    %v513 = vmax.f32 %v511, %v512
    %v514 = vsel %vm476, %v468, -inf
    %v515 = vsel %vm478, %v469, -inf
    %v516 = vmax.f32 %v514, %v515
    %v517 = vrot.slane %v516, 4
    %v518 = vmax.f32 %v516, %v517
    %v519 = vrot.slane %v518, 2
    %v520 = vmax.f32 %v518, %v519
    %v521 = vrot.slane %v520, 1
    %v522 = vmax.f32 %v520, %v521
    %v523 = vsel %vm476, %v470, -inf
    %v524 = vsel %vm478, %v471, -inf
    %v525 = vmax.f32 %v523, %v524
    %v526 = vrot.slane %v525, 4
    %v527 = vmax.f32 %v525, %v526
    %v528 = vrot.slane %v527, 2
    %v529 = vmax.f32 %v527, %v528
    %v530 = vrot.slane %v529, 1
    %v531 = vmax.f32 %v529, %v530
    %v532 = vsel %vm476, %v472, -inf
    %v533 = vsel %vm478, %v473, -inf
    %v534 = vmax.f32 %v532, %v533
    %v535 = vrot.slane %v534, 4
    %v536 = vmax.f32 %v534, %v535
    %v537 = vrot.slane %v536, 2
    %v538 = vmax.f32 %v536, %v537
    %v539 = vrot.slane %v538, 1
    %v540 = vmax.f32 %v538, %v539
    %v541 = vsel %vm476, %v474, -inf
    %v542 = vsel %vm478, %v475, -inf
    %v543 = vmax.f32 %v541, %v542
    %v544 = vrot.slane %v543, 4
    %v545 = vmax.f32 %v543, %v544
    %v546 = vrot.slane %v545, 2
    %v547 = vmax.f32 %v545, %v546
    %v548 = vrot.slane %v547, 1
    %v549 = vmax.f32 %v547, %v548
    %vm550 = vcmask 1045504
    %v551 = vrot.slane %v180, 2
    %v552 = vrot.slane %v184, 2
    %v553 = vsel %vm550, %v551, %v552
    %v554 = vrot.slane %v190, 2
    %v555 = vrot.slane %v194, 2
    %v556 = vsel %vm550, %v554, %v555
    %v557 = vrot.slane %v200, 2
    %v558 = vrot.slane %v204, 2
    %v559 = vsel %vm550, %v557, %v558
    %v560 = vrot.slane %v210, 2
    %v561 = vrot.slane %v214, 2
    %v562 = vsel %vm550, %v560, %v561
    %v563 = vrot.slane %v220, 2
    %v564 = vrot.slane %v224, 2
    %v565 = vsel %vm550, %v563, %v564
    %v566 = vrot.slane %v230, 2
    %v567 = vrot.slane %v234, 2
    %v568 = vsel %vm550, %v566, %v567
    %v569 = vrot.slane %v240, 2
    %v570 = vrot.slane %v244, 2
    %v571 = vsel %vm550, %v569, %v570
    %v572 = vrot.slane %v250, 2
    %v573 = vrot.slane %v254, 2
    %v574 = vsel %vm550, %v572, %v573
    %575 = vrot.lane.b32.xlu0 %v553, 88
    %v576 = vpop.permute.xlu0 %575
    %577 = vrot.lane.b32.xlu0 %v552, 88
    %v578 = vpop.permute.xlu0 %577
    %579 = vrot.lane.b32.xlu0 %v556, 88
    %v580 = vpop.permute.xlu0 %579
    %581 = vrot.lane.b32.xlu0 %v555, 88
    %v582 = vpop.permute.xlu0 %581
    %583 = vrot.lane.b32.xlu0 %v559, 88
    %v584 = vpop.permute.xlu0 %583
    %585 = vrot.lane.b32.xlu0 %v558, 88
    %v586 = vpop.permute.xlu0 %585
    %587 = vrot.lane.b32.xlu0 %v562, 88
    %v588 = vpop.permute.xlu0 %587
    %589 = vrot.lane.b32.xlu0 %v561, 88
    %v590 = vpop.permute.xlu0 %589
    %591 = vrot.lane.b32.xlu0 %v565, 88
    %v592 = vpop.permute.xlu0 %591
    %593 = vrot.lane.b32.xlu0 %v564, 88
    %v594 = vpop.permute.xlu0 %593
    %595 = vrot.lane.b32.xlu0 %v568, 88
    %v596 = vpop.permute.xlu0 %595
    %597 = vrot.lane.b32.xlu0 %v567, 88
    %v598 = vpop.permute.xlu0 %597
    %599 = vrot.lane.b32.xlu0 %v571, 88
    %v600 = vpop.permute.xlu0 %599
    %601 = vrot.lane.b32.xlu0 %v570, 88
    %v602 = vpop.permute.xlu0 %601
    %603 = vrot.lane.b32.xlu0 %v574, 88
    %v604 = vpop.permute.xlu0 %603
    %605 = vrot.lane.b32.xlu0 %v573, 88
    %v606 = vpop.permute.xlu0 %605
    %v623 = vadd.f32 %v460, %v576
    %v624 = vadd.f32 %v461, %v578
    %v625 = vadd.f32 %v462, %v580
    %v626 = vadd.f32 %v463, %v582
    %v627 = vadd.f32 %v464, %v584
    %v628 = vadd.f32 %v465, %v586
    %v629 = vadd.f32 %v466, %v588
    %v630 = vadd.f32 %v467, %v590
    %v631 = vadd.f32 %v468, %v592
    %v632 = vadd.f32 %v469, %v594
    %v633 = vadd.f32 %v470, %v596
    %v634 = vadd.f32 %v471, %v598
    %v635 = vadd.f32 %v472, %v600
    %v636 = vadd.f32 %v473, %v602
    %v637 = vadd.f32 %v474, %v604
    %v638 = vadd.f32 %v475, %v606
    %vm639 = vcmask 490816
    %v640 = vsel %vm639, %v623, -inf
    %vm641 = vcmask 488768
    %v642 = vsel %vm641, %v624, -inf
    %v643 = vmax.f32 %v640, %v642
    %v644 = vrot.slane %v643, 4
    %v645 = vmax.f32 %v643, %v644
    %v646 = vrot.slane %v645, 2
    %v647 = vmax.f32 %v645, %v646
    %v648 = vrot.slane %v647, 1
    %v649 = vmax.f32 %v647, %v648
    %v650 = vsel %vm639, %v625, -inf
    %v651 = vsel %vm641, %v626, -inf
    %v652 = vmax.f32 %v650, %v651
    %v653 = vrot.slane %v652, 4
    %v654 = vmax.f32 %v652, %v653
    %v655 = vrot.slane %v654, 2
    %v656 = vmax.f32 %v654, %v655
    %v657 = vrot.slane %v656, 1
    %v658 = vmax.f32 %v656, %v657
    %v659 = vsel %vm639, %v627, -inf
    %v660 = vsel %vm641, %v628, -inf
    %v661 = vmax.f32 %v659, %v660
    %v662 = vrot.slane %v661, 4
    %v663 = vmax.f32 %v661, %v662
    %v664 = vrot.slane %v663, 2
    %v665 = vmax.f32 %v663, %v664
    %v666 = vrot.slane %v665, 1
    %v667 = vmax.f32 %v665, %v666
    %v668 = vsel %vm639, %v629, -inf
    %v669 = vsel %vm641, %v630, -inf
    %v670 = vmax.f32 %v668, %v669
    %v671 = vrot.slane %v670, 4
    %v672 = vmax.f32 %v670, %v671
    %v673 = vrot.slane %v672, 2
    %v674 = vmax.f32 %v672, %v673
    %v675 = vrot.slane %v674, 1
    %v676 = vmax.f32 %v674, %v675
    %v677 = vsel %vm639, %v631, -inf
    %v678 = vsel %vm641, %v632, -inf
    %v679 = vmax.f32 %v677, %v678
    %v680 = vrot.slane %v679, 4
    %v681 = vmax.f32 %v679, %v680
    %v682 = vrot.slane %v681, 2
    %v683 = vmax.f32 %v681, %v682
    %v684 = vrot.slane %v683, 1
    %v685 = vmax.f32 %v683, %v684
    %v686 = vsel %vm639, %v633, -inf
    %v687 = vsel %vm641, %v634, -inf
    %v688 = vmax.f32 %v686, %v687
    %v689 = vrot.slane %v688, 4
    %v690 = vmax.f32 %v688, %v689
    %v691 = vrot.slane %v690, 2
    %v692 = vmax.f32 %v690, %v691
    %v693 = vrot.slane %v692, 1
    %v694 = vmax.f32 %v692, %v693
    %v695 = vsel %vm639, %v635, -inf
    %v696 = vsel %vm641, %v636, -inf
    %v697 = vmax.f32 %v695, %v696
    %v698 = vrot.slane %v697, 4
    %v699 = vmax.f32 %v697, %v698
    %v700 = vrot.slane %v699, 2
    %v701 = vmax.f32 %v699, %v700
    %v702 = vrot.slane %v701, 1
    %v703 = vmax.f32 %v701, %v702
    %v704 = vsel %vm639, %v637, -inf
    %v705 = vsel %vm641, %v638, -inf
    %v706 = vmax.f32 %v704, %v705
    %v707 = vrot.slane %v706, 4
    %v708 = vmax.f32 %v706, %v707
    %v709 = vrot.slane %v708, 2
    %v710 = vmax.f32 %v708, %v709
    %v711 = vrot.slane %v710, 1
    %v712 = vmax.f32 %v710, %v711
    %v729 = vrot.slane %v182, 1
    %v730 = vrot.slane %v186, 1
    %v731 = vsel %vm387, %v729, %v730
    %v732 = vrot.slane %v192, 1
    %v733 = vrot.slane %v196, 1
    %v734 = vsel %vm387, %v732, %v733
    %v735 = vrot.slane %v202, 1
    %v736 = vrot.slane %v206, 1
    %v737 = vsel %vm387, %v735, %v736
    %v738 = vrot.slane %v212, 1
    %v739 = vrot.slane %v216, 1
    %v740 = vsel %vm387, %v738, %v739
    %v741 = vrot.slane %v222, 1
    %v742 = vrot.slane %v226, 1
    %v743 = vsel %vm387, %v741, %v742
    %v744 = vrot.slane %v232, 1
    %v745 = vrot.slane %v236, 1
    %v746 = vsel %vm387, %v744, %v745
    %v747 = vrot.slane %v242, 1
    %v748 = vrot.slane %v246, 1
    %v749 = vsel %vm387, %v747, %v748
    %v750 = vrot.slane %v252, 1
    %v751 = vrot.slane %v256, 1
    %v752 = vsel %vm387, %v750, %v751
    %753 = vrot.lane.b32.xlu0 %v731, 108
    %v754 = vpop.permute.xlu0 %753
    %755 = vrot.lane.b32.xlu0 %v730, 108
    %v756 = vpop.permute.xlu0 %755
    %757 = vrot.lane.b32.xlu0 %v734, 108
    %v758 = vpop.permute.xlu0 %757
    %759 = vrot.lane.b32.xlu0 %v733, 108
    %v760 = vpop.permute.xlu0 %759
    %761 = vrot.lane.b32.xlu0 %v737, 108
    %v762 = vpop.permute.xlu0 %761
    %763 = vrot.lane.b32.xlu0 %v736, 108
    %v764 = vpop.permute.xlu0 %763
    %765 = vrot.lane.b32.xlu0 %v740, 108
    %v766 = vpop.permute.xlu0 %765
    %767 = vrot.lane.b32.xlu0 %v739, 108
    %v768 = vpop.permute.xlu0 %767
    %769 = vrot.lane.b32.xlu0 %v743, 108
    %v770 = vpop.permute.xlu0 %769
    %771 = vrot.lane.b32.xlu0 %v742, 108
    %v772 = vpop.permute.xlu0 %771
    %773 = vrot.lane.b32.xlu0 %v746, 108
    %v774 = vpop.permute.xlu0 %773
    %775 = vrot.lane.b32.xlu0 %v745, 108
    %v776 = vpop.permute.xlu0 %775
    %777 = vrot.lane.b32.xlu0 %v749, 108
    %v778 = vpop.permute.xlu0 %777
    %779 = vrot.lane.b32.xlu0 %v748, 108
    %v780 = vpop.permute.xlu0 %779
    %781 = vrot.lane.b32.xlu0 %v752, 108
    %v782 = vpop.permute.xlu0 %781
    %783 = vrot.lane.b32.xlu0 %v751, 108
    %v784 = vpop.permute.xlu0 %783
    %vm785 = vcmask 883712
    %v786 = vsel %vm785, %v413, %v754
    %v787 = vsel %vm785, %v415, %v756
    %v788 = vsel %vm785, %v417, %v758
    %v789 = vsel %vm785, %v419, %v760
    %v790 = vsel %vm785, %v421, %v762
    %v791 = vsel %vm785, %v423, %v764
    %v792 = vsel %vm785, %v425, %v766
    %v793 = vsel %vm785, %v427, %v768
    %v794 = vsel %vm785, %v429, %v770
    %v795 = vsel %vm785, %v431, %v772
    %v796 = vsel %vm785, %v433, %v774
    %v797 = vsel %vm785, %v435, %v776
    %v798 = vsel %vm785, %v437, %v778
    %v799 = vsel %vm785, %v439, %v780
    %v800 = vsel %vm785, %v441, %v782
    %v801 = vsel %vm785, %v443, %v784
    %v818 = vadd.f32 %v180, %v786
    %v819 = vadd.f32 %v184, %v787
    %v820 = vadd.f32 %v190, %v788
    %v821 = vadd.f32 %v194, %v789
    %v822 = vadd.f32 %v200, %v790
    %v823 = vadd.f32 %v204, %v791
    %v824 = vadd.f32 %v210, %v792
    %v825 = vadd.f32 %v214, %v793
    %v826 = vadd.f32 %v220, %v794
    %v827 = vadd.f32 %v224, %v795
    %v828 = vadd.f32 %v230, %v796
    %v829 = vadd.f32 %v234, %v797
    %v830 = vadd.f32 %v240, %v798
    %v831 = vadd.f32 %v244, %v799
    %v832 = vadd.f32 %v250, %v800
    %v833 = vadd.f32 %v254, %v801
    %v834 = vrot.slane %v182, 2
    %v835 = vrot.slane %v186, 2
    %v836 = vsel %vm550, %v834, %v835
    %v837 = vrot.slane %v192, 2
    %v838 = vrot.slane %v196, 2
    %v839 = vsel %vm550, %v837, %v838
    %v840 = vrot.slane %v202, 2
    %v841 = vrot.slane %v206, 2
    %v842 = vsel %vm550, %v840, %v841
    %v843 = vrot.slane %v212, 2
    %v844 = vrot.slane %v216, 2
    %v845 = vsel %vm550, %v843, %v844
    %v846 = vrot.slane %v222, 2
    %v847 = vrot.slane %v226, 2
    %v848 = vsel %vm550, %v846, %v847
    %v849 = vrot.slane %v232, 2
    %v850 = vrot.slane %v236, 2
    %v851 = vsel %vm550, %v849, %v850
    %v852 = vrot.slane %v242, 2
    %v853 = vrot.slane %v246, 2
    %v854 = vsel %vm550, %v852, %v853
    %v855 = vrot.slane %v252, 2
    %v856 = vrot.slane %v256, 2
    %v857 = vsel %vm550, %v855, %v856
    %858 = vrot.lane.b32.xlu0 %v836, 88
    %v859 = vpop.permute.xlu0 %858
    %860 = vrot.lane.b32.xlu0 %v835, 88
    %v861 = vpop.permute.xlu0 %860
    %862 = vrot.lane.b32.xlu0 %v839, 88
    %v863 = vpop.permute.xlu0 %862
    %864 = vrot.lane.b32.xlu0 %v838, 88
    %v865 = vpop.permute.xlu0 %864
    %866 = vrot.lane.b32.xlu0 %v842, 88
    %v867 = vpop.permute.xlu0 %866
    %868 = vrot.lane.b32.xlu0 %v841, 88
    %v869 = vpop.permute.xlu0 %868
    %870 = vrot.lane.b32.xlu0 %v845, 88
    %v871 = vpop.permute.xlu0 %870
    %872 = vrot.lane.b32.xlu0 %v844, 88
    %v873 = vpop.permute.xlu0 %872
    %874 = vrot.lane.b32.xlu0 %v848, 88
    %v875 = vpop.permute.xlu0 %874
    %876 = vrot.lane.b32.xlu0 %v847, 88
    %v877 = vpop.permute.xlu0 %876
    %878 = vrot.lane.b32.xlu0 %v851, 88
    %v879 = vpop.permute.xlu0 %878
    %880 = vrot.lane.b32.xlu0 %v850, 88
    %v881 = vpop.permute.xlu0 %880
    %882 = vrot.lane.b32.xlu0 %v854, 88
    %v883 = vpop.permute.xlu0 %882
    %884 = vrot.lane.b32.xlu0 %v853, 88
    %v885 = vpop.permute.xlu0 %884
    %886 = vrot.lane.b32.xlu0 %v857, 88
    %v887 = vpop.permute.xlu0 %886
    %888 = vrot.lane.b32.xlu0 %v856, 88
    %v889 = vpop.permute.xlu0 %888
    %v906 = vadd.f32 %v818, %v859
    %v907 = vadd.f32 %v819, %v861
    %v908 = vadd.f32 %v820, %v863
    %v909 = vadd.f32 %v821, %v865
    %v910 = vadd.f32 %v822, %v867
    %v911 = vadd.f32 %v823, %v869
    %v912 = vadd.f32 %v824, %v871
    %v913 = vadd.f32 %v825, %v873
    %v914 = vadd.f32 %v826, %v875
    %v915 = vadd.f32 %v827, %v877
    %v916 = vadd.f32 %v828, %v879
    %v917 = vadd.f32 %v829, %v881
    %v918 = vadd.f32 %v830, %v883
    %v919 = vadd.f32 %v831, %v885
    %v920 = vadd.f32 %v832, %v887
    %v921 = vadd.f32 %v833, %v889
    %vm922 = vcmask 1044480
    %v923 = vrot.slane %v182, 3
    %v924 = vrot.slane %v186, 3
    %v925 = vsel %vm922, %v923, %v924
    %v926 = vrot.slane %v192, 3
    %v927 = vrot.slane %v196, 3
    %v928 = vsel %vm922, %v926, %v927
    %v929 = vrot.slane %v202, 3
    %v930 = vrot.slane %v206, 3
    %v931 = vsel %vm922, %v929, %v930
    %v932 = vrot.slane %v212, 3
    %v933 = vrot.slane %v216, 3
    %v934 = vsel %vm922, %v932, %v933
    %v935 = vrot.slane %v222, 3
    %v936 = vrot.slane %v226, 3
    %v937 = vsel %vm922, %v935, %v936
    %v938 = vrot.slane %v232, 3
    %v939 = vrot.slane %v236, 3
    %v940 = vsel %vm922, %v938, %v939
    %v941 = vrot.slane %v242, 3
    %v942 = vrot.slane %v246, 3
    %v943 = vsel %vm922, %v941, %v942
    %v944 = vrot.slane %v252, 3
    %v945 = vrot.slane %v256, 3
    %v946 = vsel %vm922, %v944, %v945
    %947 = vrot.lane.b32.xlu0 %v925, 68
    %v948 = vpop.permute.xlu0 %947
    %949 = vrot.lane.b32.xlu0 %v924, 68
    %v950 = vpop.permute.xlu0 %949
    %951 = vrot.lane.b32.xlu0 %v928, 68
    %v952 = vpop.permute.xlu0 %951
    %953 = vrot.lane.b32.xlu0 %v927, 68
    %v954 = vpop.permute.xlu0 %953
    %955 = vrot.lane.b32.xlu0 %v931, 68
    %v956 = vpop.permute.xlu0 %955
    %957 = vrot.lane.b32.xlu0 %v930, 68
    %v958 = vpop.permute.xlu0 %957
    %959 = vrot.lane.b32.xlu0 %v934, 68
    %v960 = vpop.permute.xlu0 %959
    %961 = vrot.lane.b32.xlu0 %v933, 68
    %v962 = vpop.permute.xlu0 %961
    %963 = vrot.lane.b32.xlu0 %v937, 68
    %v964 = vpop.permute.xlu0 %963
    %965 = vrot.lane.b32.xlu0 %v936, 68
    %v966 = vpop.permute.xlu0 %965
    %967 = vrot.lane.b32.xlu0 %v940, 68
    %v968 = vpop.permute.xlu0 %967
    %969 = vrot.lane.b32.xlu0 %v939, 68
    %v970 = vpop.permute.xlu0 %969
    %971 = vrot.lane.b32.xlu0 %v943, 68
    %v972 = vpop.permute.xlu0 %971
    %973 = vrot.lane.b32.xlu0 %v942, 68
    %v974 = vpop.permute.xlu0 %973
    %975 = vrot.lane.b32.xlu0 %v946, 68
    %v976 = vpop.permute.xlu0 %975
    %977 = vrot.lane.b32.xlu0 %v945, 68
    %v978 = vpop.permute.xlu0 %977
    %v995 = vadd.f32 %v906, %v948
    %v996 = vadd.f32 %v907, %v950
    %v997 = vadd.f32 %v908, %v952
    %v998 = vadd.f32 %v909, %v954
    %v999 = vadd.f32 %v910, %v956
    %v1000 = vadd.f32 %v911, %v958
    %v1001 = vadd.f32 %v912, %v960
    %v1002 = vadd.f32 %v913, %v962
    %v1003 = vadd.f32 %v914, %v964
    %v1004 = vadd.f32 %v915, %v966
    %v1005 = vadd.f32 %v916, %v968
    %v1006 = vadd.f32 %v917, %v970
    %v1007 = vadd.f32 %v918, %v972
    %v1008 = vadd.f32 %v919, %v974
    %v1009 = vadd.f32 %v920, %v976
    %v1010 = vadd.f32 %v921, %v978
    %vm1011 = vcmask 982816
    %v1012 = vsel %vm1011, %v995, -inf
    %vm1013 = vcmask 979744
    %v1014 = vsel %vm1013, %v996, -inf
    %v1015 = vmax.f32 %v1012, %v1014
    %v1016 = vrot.slane %v1015, 4
    %v1017 = vmax.f32 %v1015, %v1016
    %v1018 = vrot.slane %v1017, 2
    %v1019 = vmax.f32 %v1017, %v1018
    %v1020 = vrot.slane %v1019, 1
    %v1021 = vmax.f32 %v1019, %v1020
    %v1022 = vsel %vm1011, %v997, -inf
    %v1023 = vsel %vm1013, %v998, -inf
    %v1024 = vmax.f32 %v1022, %v1023
    %v1025 = vrot.slane %v1024, 4
    %v1026 = vmax.f32 %v1024, %v1025
    %v1027 = vrot.slane %v1026, 2
    %v1028 = vmax.f32 %v1026, %v1027
    %v1029 = vrot.slane %v1028, 1
    %v1030 = vmax.f32 %v1028, %v1029
    %v1031 = vsel %vm1011, %v999, -inf
    %v1032 = vsel %vm1013, %v1000, -inf
    %v1033 = vmax.f32 %v1031, %v1032
    %v1034 = vrot.slane %v1033, 4
    %v1035 = vmax.f32 %v1033, %v1034
    %v1036 = vrot.slane %v1035, 2
    %v1037 = vmax.f32 %v1035, %v1036
    %v1038 = vrot.slane %v1037, 1
    %v1039 = vmax.f32 %v1037, %v1038
    %v1040 = vsel %vm1011, %v1001, -inf
    %v1041 = vsel %vm1013, %v1002, -inf
    %v1042 = vmax.f32 %v1040, %v1041
    %v1043 = vrot.slane %v1042, 4
    %v1044 = vmax.f32 %v1042, %v1043
    %v1045 = vrot.slane %v1044, 2
    %v1046 = vmax.f32 %v1044, %v1045
    %v1047 = vrot.slane %v1046, 1
    %v1048 = vmax.f32 %v1046, %v1047
    %v1049 = vsel %vm1011, %v1003, -inf
    %v1050 = vsel %vm1013, %v1004, -inf
    %v1051 = vmax.f32 %v1049, %v1050
    %v1052 = vrot.slane %v1051, 4
    %v1053 = vmax.f32 %v1051, %v1052
    %v1054 = vrot.slane %v1053, 2
    %v1055 = vmax.f32 %v1053, %v1054
    %v1056 = vrot.slane %v1055, 1
    %v1057 = vmax.f32 %v1055, %v1056
    %v1058 = vsel %vm1011, %v1005, -inf
    %v1059 = vsel %vm1013, %v1006, -inf
    %v1060 = vmax.f32 %v1058, %v1059
    %v1061 = vrot.slane %v1060, 4
    %v1062 = vmax.f32 %v1060, %v1061
    %v1063 = vrot.slane %v1062, 2
    %v1064 = vmax.f32 %v1062, %v1063
    %v1065 = vrot.slane %v1064, 1
    %v1066 = vmax.f32 %v1064, %v1065
    %v1067 = vsel %vm1011, %v1007, -inf
    %v1068 = vsel %vm1013, %v1008, -inf
    %v1069 = vmax.f32 %v1067, %v1068
    %v1070 = vrot.slane %v1069, 4
    %v1071 = vmax.f32 %v1069, %v1070
    %v1072 = vrot.slane %v1071, 2
    %v1073 = vmax.f32 %v1071, %v1072
    %v1074 = vrot.slane %v1073, 1
    %v1075 = vmax.f32 %v1073, %v1074
    %v1076 = vsel %vm1011, %v1009, -inf
    %v1077 = vsel %vm1013, %v1010, -inf
    %v1078 = vmax.f32 %v1076, %v1077
    %v1079 = vrot.slane %v1078, 4
    %v1080 = vmax.f32 %v1078, %v1079
    %v1081 = vrot.slane %v1080, 2
    %v1082 = vmax.f32 %v1080, %v1081
    %v1083 = vrot.slane %v1082, 1
    %v1084 = vmax.f32 %v1082, %v1083
    %v1101 = vadd.f32 %v182, %v754
    %v1102 = vadd.f32 %v186, %v756
    %v1103 = vadd.f32 %v192, %v758
    %v1104 = vadd.f32 %v196, %v760
    %v1105 = vadd.f32 %v202, %v762
    %v1106 = vadd.f32 %v206, %v764
    %v1107 = vadd.f32 %v212, %v766
    %v1108 = vadd.f32 %v216, %v768
    %v1109 = vadd.f32 %v222, %v770
    %v1110 = vadd.f32 %v226, %v772
    %v1111 = vadd.f32 %v232, %v774
    %v1112 = vadd.f32 %v236, %v776
    %v1113 = vadd.f32 %v242, %v778
    %v1114 = vadd.f32 %v246, %v780
    %v1115 = vadd.f32 %v252, %v782
    %v1116 = vadd.f32 %v256, %v784
    %v1117 = vadd.f32 %v1101, %v859
    %v1118 = vadd.f32 %v1102, %v861
    %v1119 = vadd.f32 %v1103, %v863
    %v1120 = vadd.f32 %v1104, %v865
    %v1121 = vadd.f32 %v1105, %v867
    %v1122 = vadd.f32 %v1106, %v869
    %v1123 = vadd.f32 %v1107, %v871
    %v1124 = vadd.f32 %v1108, %v873
    %v1125 = vadd.f32 %v1109, %v875
    %v1126 = vadd.f32 %v1110, %v877
    %v1127 = vadd.f32 %v1111, %v879
    %v1128 = vadd.f32 %v1112, %v881
    %v1129 = vadd.f32 %v1113, %v883
    %v1130 = vadd.f32 %v1114, %v885
    %v1131 = vadd.f32 %v1115, %v887
    %v1132 = vadd.f32 %v1116, %v889
    %v1149 = vrot.slane %v293, 3
    %v1150 = vrot.slane %v297, 3
    %v1151 = vsel %vm922, %v1149, %v1150
    %v1152 = vrot.slane %v303, 3
    %v1153 = vrot.slane %v307, 3
    %v1154 = vsel %vm922, %v1152, %v1153
    %v1155 = vrot.slane %v313, 3
    %v1156 = vrot.slane %v317, 3
    %v1157 = vsel %vm922, %v1155, %v1156
    %v1158 = vrot.slane %v323, 3
    %v1159 = vrot.slane %v327, 3
    %v1160 = vsel %vm922, %v1158, %v1159
    %v1161 = vrot.slane %v333, 3
    %v1162 = vrot.slane %v337, 3
    %v1163 = vsel %vm922, %v1161, %v1162
    %v1164 = vrot.slane %v343, 3
    %v1165 = vrot.slane %v347, 3
    %v1166 = vsel %vm922, %v1164, %v1165
    %v1167 = vrot.slane %v353, 3
    %v1168 = vrot.slane %v357, 3
    %v1169 = vsel %vm922, %v1167, %v1168
    %v1170 = vrot.slane %v363, 3
    %v1171 = vrot.slane %v367, 3
    %v1172 = vsel %vm922, %v1170, %v1171
    %1173 = vrot.lane.b32.xlu0 %v1151, 68
    %v1174 = vpop.permute.xlu0 %1173
    %1175 = vrot.lane.b32.xlu0 %v1150, 68
    %v1176 = vpop.permute.xlu0 %1175
    %1177 = vrot.lane.b32.xlu0 %v1154, 68
    %v1178 = vpop.permute.xlu0 %1177
    %1179 = vrot.lane.b32.xlu0 %v1153, 68
    %v1180 = vpop.permute.xlu0 %1179
    %1181 = vrot.lane.b32.xlu0 %v1157, 68
    %v1182 = vpop.permute.xlu0 %1181
    %1183 = vrot.lane.b32.xlu0 %v1156, 68
    %v1184 = vpop.permute.xlu0 %1183
    %1185 = vrot.lane.b32.xlu0 %v1160, 68
    %v1186 = vpop.permute.xlu0 %1185
    %1187 = vrot.lane.b32.xlu0 %v1159, 68
    %v1188 = vpop.permute.xlu0 %1187
    %1189 = vrot.lane.b32.xlu0 %v1163, 68
    %v1190 = vpop.permute.xlu0 %1189
    %1191 = vrot.lane.b32.xlu0 %v1162, 68
    %v1192 = vpop.permute.xlu0 %1191
    %1193 = vrot.lane.b32.xlu0 %v1166, 68
    %v1194 = vpop.permute.xlu0 %1193
    %1195 = vrot.lane.b32.xlu0 %v1165, 68
    %v1196 = vpop.permute.xlu0 %1195
    %1197 = vrot.lane.b32.xlu0 %v1169, 68
    %v1198 = vpop.permute.xlu0 %1197
    %1199 = vrot.lane.b32.xlu0 %v1168, 68
    %v1200 = vpop.permute.xlu0 %1199
    %1201 = vrot.lane.b32.xlu0 %v1172, 68
    %v1202 = vpop.permute.xlu0 %1201
    %1203 = vrot.lane.b32.xlu0 %v1171, 68
    %v1204 = vpop.permute.xlu0 %1203
    %vm1205 = vcmask 556032
    %v1206 = vsel %vm1205, %v948, %v1174
    %v1207 = vsel %vm1205, %v950, %v1176
    %v1208 = vsel %vm1205, %v952, %v1178
    %v1209 = vsel %vm1205, %v954, %v1180
    %v1210 = vsel %vm1205, %v956, %v1182
    %v1211 = vsel %vm1205, %v958, %v1184
    %v1212 = vsel %vm1205, %v960, %v1186
    %v1213 = vsel %vm1205, %v962, %v1188
    %v1214 = vsel %vm1205, %v964, %v1190
    %v1215 = vsel %vm1205, %v966, %v1192
    %v1216 = vsel %vm1205, %v968, %v1194
    %v1217 = vsel %vm1205, %v970, %v1196
    %v1218 = vsel %vm1205, %v972, %v1198
    %v1219 = vsel %vm1205, %v974, %v1200
    %v1220 = vsel %vm1205, %v976, %v1202
    %v1221 = vsel %vm1205, %v978, %v1204
    %v1238 = vadd.f32 %v1117, %v1206
    %v1239 = vadd.f32 %v1118, %v1207
    %v1240 = vadd.f32 %v1119, %v1208
    %v1241 = vadd.f32 %v1120, %v1209
    %v1242 = vadd.f32 %v1121, %v1210
    %v1243 = vadd.f32 %v1122, %v1211
    %v1244 = vadd.f32 %v1123, %v1212
    %v1245 = vadd.f32 %v1124, %v1213
    %v1246 = vadd.f32 %v1125, %v1214
    %v1247 = vadd.f32 %v1126, %v1215
    %v1248 = vadd.f32 %v1127, %v1216
    %v1249 = vadd.f32 %v1128, %v1217
    %v1250 = vadd.f32 %v1129, %v1218
    %v1251 = vadd.f32 %v1130, %v1219
    %v1252 = vadd.f32 %v1131, %v1220
    %v1253 = vadd.f32 %v1132, %v1221
    %vm1254 = vcmask 1043456
    %v1255 = vrot.slane %v293, 4
    %v1256 = vrot.slane %v297, 4
    %v1257 = vsel %vm1254, %v1255, %v1256
    %v1258 = vrot.slane %v303, 4
    %v1259 = vrot.slane %v307, 4
    %v1260 = vsel %vm1254, %v1258, %v1259
    %v1261 = vrot.slane %v313, 4
    %v1262 = vrot.slane %v317, 4
    %v1263 = vsel %vm1254, %v1261, %v1262
    %v1264 = vrot.slane %v323, 4
    %v1265 = vrot.slane %v327, 4
    %v1266 = vsel %vm1254, %v1264, %v1265
    %v1267 = vrot.slane %v333, 4
    %v1268 = vrot.slane %v337, 4
    %v1269 = vsel %vm1254, %v1267, %v1268
    %v1270 = vrot.slane %v343, 4
    %v1271 = vrot.slane %v347, 4
    %v1272 = vsel %vm1254, %v1270, %v1271
    %v1273 = vrot.slane %v353, 4
    %v1274 = vrot.slane %v357, 4
    %v1275 = vsel %vm1254, %v1273, %v1274
    %v1276 = vrot.slane %v363, 4
    %v1277 = vrot.slane %v367, 4
    %v1278 = vsel %vm1254, %v1276, %v1277
    %1279 = vrot.lane.b32.xlu0 %v1257, 48
    %v1280 = vpop.permute.xlu0 %1279
    %1281 = vrot.lane.b32.xlu0 %v1256, 48
    %v1282 = vpop.permute.xlu0 %1281
    %1283 = vrot.lane.b32.xlu0 %v1260, 48
    %v1284 = vpop.permute.xlu0 %1283
    %1285 = vrot.lane.b32.xlu0 %v1259, 48
    %v1286 = vpop.permute.xlu0 %1285
    %1287 = vrot.lane.b32.xlu0 %v1263, 48
    %v1288 = vpop.permute.xlu0 %1287
    %1289 = vrot.lane.b32.xlu0 %v1262, 48
    %v1290 = vpop.permute.xlu0 %1289
    %1291 = vrot.lane.b32.xlu0 %v1266, 48
    %v1292 = vpop.permute.xlu0 %1291
    %1293 = vrot.lane.b32.xlu0 %v1265, 48
    %v1294 = vpop.permute.xlu0 %1293
    %1295 = vrot.lane.b32.xlu0 %v1269, 48
    %v1296 = vpop.permute.xlu0 %1295
    %1297 = vrot.lane.b32.xlu0 %v1268, 48
    %v1298 = vpop.permute.xlu0 %1297
    %1299 = vrot.lane.b32.xlu0 %v1272, 48
    %v1300 = vpop.permute.xlu0 %1299
    %1301 = vrot.lane.b32.xlu0 %v1271, 48
    %v1302 = vpop.permute.xlu0 %1301
    %1303 = vrot.lane.b32.xlu0 %v1275, 48
    %v1304 = vpop.permute.xlu0 %1303
    %1305 = vrot.lane.b32.xlu0 %v1274, 48
    %v1306 = vpop.permute.xlu0 %1305
    %1307 = vrot.lane.b32.xlu0 %v1278, 48
    %v1308 = vpop.permute.xlu0 %1307
    %1309 = vrot.lane.b32.xlu0 %v1277, 48
    %v1310 = vpop.permute.xlu0 %1309
    %v1327 = vadd.f32 %v1238, %v1280
    %v1328 = vadd.f32 %v1239, %v1282
    %v1329 = vadd.f32 %v1240, %v1284
    %v1330 = vadd.f32 %v1241, %v1286
    %v1331 = vadd.f32 %v1242, %v1288
    %v1332 = vadd.f32 %v1243, %v1290
    %v1333 = vadd.f32 %v1244, %v1292
    %v1334 = vadd.f32 %v1245, %v1294
    %v1335 = vadd.f32 %v1246, %v1296
    %v1336 = vadd.f32 %v1247, %v1298
    %v1337 = vadd.f32 %v1248, %v1300
    %v1338 = vadd.f32 %v1249, %v1302
    %v1339 = vadd.f32 %v1250, %v1304
    %v1340 = vadd.f32 %v1251, %v1306
    %v1341 = vadd.f32 %v1252, %v1308
    %v1342 = vadd.f32 %v1253, %v1310
    %vm1343 = vcmask 589216
    %v1344 = vsel %vm1343, %v1327, -inf
    %vm1345 = vcmask 585120
    %v1346 = vsel %vm1345, %v1328, -inf
    %v1347 = vmax.f32 %v1344, %v1346
    %v1348 = vrot.slane %v1347, 4
    %v1349 = vmax.f32 %v1347, %v1348
    %v1350 = vrot.slane %v1349, 2
    %v1351 = vmax.f32 %v1349, %v1350
    %v1352 = vrot.slane %v1351, 1
    %v1353 = vmax.f32 %v1351, %v1352
    %v1354 = vsel %vm1343, %v1329, -inf
    %v1355 = vsel %vm1345, %v1330, -inf
    %v1356 = vmax.f32 %v1354, %v1355
    %v1357 = vrot.slane %v1356, 4
    %v1358 = vmax.f32 %v1356, %v1357
    %v1359 = vrot.slane %v1358, 2
    %v1360 = vmax.f32 %v1358, %v1359
    %v1361 = vrot.slane %v1360, 1
    %v1362 = vmax.f32 %v1360, %v1361
    %v1363 = vsel %vm1343, %v1331, -inf
    %v1364 = vsel %vm1345, %v1332, -inf
    %v1365 = vmax.f32 %v1363, %v1364
    %v1366 = vrot.slane %v1365, 4
    %v1367 = vmax.f32 %v1365, %v1366
    %v1368 = vrot.slane %v1367, 2
    %v1369 = vmax.f32 %v1367, %v1368
    %v1370 = vrot.slane %v1369, 1
    %v1371 = vmax.f32 %v1369, %v1370
    %v1372 = vsel %vm1343, %v1333, -inf
    %v1373 = vsel %vm1345, %v1334, -inf
    %v1374 = vmax.f32 %v1372, %v1373
    %v1375 = vrot.slane %v1374, 4
    %v1376 = vmax.f32 %v1374, %v1375
    %v1377 = vrot.slane %v1376, 2
    %v1378 = vmax.f32 %v1376, %v1377
    %v1379 = vrot.slane %v1378, 1
    %v1380 = vmax.f32 %v1378, %v1379
    %v1381 = vsel %vm1343, %v1335, -inf
    %v1382 = vsel %vm1345, %v1336, -inf
    %v1383 = vmax.f32 %v1381, %v1382
    %v1384 = vrot.slane %v1383, 4
    %v1385 = vmax.f32 %v1383, %v1384
    %v1386 = vrot.slane %v1385, 2
    %v1387 = vmax.f32 %v1385, %v1386
    %v1388 = vrot.slane %v1387, 1
    %v1389 = vmax.f32 %v1387, %v1388
    %v1390 = vsel %vm1343, %v1337, -inf
    %v1391 = vsel %vm1345, %v1338, -inf
    %v1392 = vmax.f32 %v1390, %v1391
    %v1393 = vrot.slane %v1392, 4
    %v1394 = vmax.f32 %v1392, %v1393
    %v1395 = vrot.slane %v1394, 2
    %v1396 = vmax.f32 %v1394, %v1395
    %v1397 = vrot.slane %v1396, 1
    %v1398 = vmax.f32 %v1396, %v1397
    %v1399 = vsel %vm1343, %v1339, -inf
    %v1400 = vsel %vm1345, %v1340, -inf
    %v1401 = vmax.f32 %v1399, %v1400
    %v1402 = vrot.slane %v1401, 4
    %v1403 = vmax.f32 %v1401, %v1402
    %v1404 = vrot.slane %v1403, 2
    %v1405 = vmax.f32 %v1403, %v1404
    %v1406 = vrot.slane %v1405, 1
    %v1407 = vmax.f32 %v1405, %v1406
    %v1408 = vsel %vm1343, %v1341, -inf
    %v1409 = vsel %vm1345, %v1342, -inf
    %v1410 = vmax.f32 %v1408, %v1409
    %v1411 = vrot.slane %v1410, 4
    %v1412 = vmax.f32 %v1410, %v1411
    %v1413 = vrot.slane %v1412, 2
    %v1414 = vmax.f32 %v1412, %v1413
    %v1415 = vrot.slane %v1414, 1
    %v1416 = vmax.f32 %v1414, %v1415
    %v1417 = vrot.slane %v293, 1
    %v1418 = vrot.slane %v297, 1
    %v1419 = vsel %vm387, %v1417, %v1418
    %v1420 = vrot.slane %v303, 1
    %v1421 = vrot.slane %v307, 1
    %v1422 = vsel %vm387, %v1420, %v1421
    %v1423 = vrot.slane %v313, 1
    %v1424 = vrot.slane %v317, 1
    %v1425 = vsel %vm387, %v1423, %v1424
    %v1426 = vrot.slane %v323, 1
    %v1427 = vrot.slane %v327, 1
    %v1428 = vsel %vm387, %v1426, %v1427
    %v1429 = vrot.slane %v333, 1
    %v1430 = vrot.slane %v337, 1
    %v1431 = vsel %vm387, %v1429, %v1430
    %v1432 = vrot.slane %v343, 1
    %v1433 = vrot.slane %v347, 1
    %v1434 = vsel %vm387, %v1432, %v1433
    %v1435 = vrot.slane %v353, 1
    %v1436 = vrot.slane %v357, 1
    %v1437 = vsel %vm387, %v1435, %v1436
    %v1438 = vrot.slane %v363, 1
    %v1439 = vrot.slane %v367, 1
    %v1440 = vsel %vm387, %v1438, %v1439
    %1441 = vrot.lane.b32.xlu0 %v1419, 108
    %v1442 = vpop.permute.xlu0 %1441
    %1443 = vrot.lane.b32.xlu0 %v1418, 108
    %v1444 = vpop.permute.xlu0 %1443
    %1445 = vrot.lane.b32.xlu0 %v1422, 108
    %v1446 = vpop.permute.xlu0 %1445
    %1447 = vrot.lane.b32.xlu0 %v1421, 108
    %v1448 = vpop.permute.xlu0 %1447
    %1449 = vrot.lane.b32.xlu0 %v1425, 108
    %v1450 = vpop.permute.xlu0 %1449
    %1451 = vrot.lane.b32.xlu0 %v1424, 108
    %v1452 = vpop.permute.xlu0 %1451
    %1453 = vrot.lane.b32.xlu0 %v1428, 108
    %v1454 = vpop.permute.xlu0 %1453
    %1455 = vrot.lane.b32.xlu0 %v1427, 108
    %v1456 = vpop.permute.xlu0 %1455
    %1457 = vrot.lane.b32.xlu0 %v1431, 108
    %v1458 = vpop.permute.xlu0 %1457
    %1459 = vrot.lane.b32.xlu0 %v1430, 108
    %v1460 = vpop.permute.xlu0 %1459
    %1461 = vrot.lane.b32.xlu0 %v1434, 108
    %v1462 = vpop.permute.xlu0 %1461
    %1463 = vrot.lane.b32.xlu0 %v1433, 108
    %v1464 = vpop.permute.xlu0 %1463
    %1465 = vrot.lane.b32.xlu0 %v1437, 108
    %v1466 = vpop.permute.xlu0 %1465
    %1467 = vrot.lane.b32.xlu0 %v1436, 108
    %v1468 = vpop.permute.xlu0 %1467
    %1469 = vrot.lane.b32.xlu0 %v1440, 108
    %v1470 = vpop.permute.xlu0 %1469
    %1471 = vrot.lane.b32.xlu0 %v1439, 108
    %v1472 = vpop.permute.xlu0 %1471
    %v1489 = vadd.f32 %v293, %v1442
    %v1490 = vadd.f32 %v297, %v1444
    %v1491 = vadd.f32 %v303, %v1446
    %v1492 = vadd.f32 %v307, %v1448
    %v1493 = vadd.f32 %v313, %v1450
    %v1494 = vadd.f32 %v317, %v1452
    %v1495 = vadd.f32 %v323, %v1454
    %v1496 = vadd.f32 %v327, %v1456
    %v1497 = vadd.f32 %v333, %v1458
    %v1498 = vadd.f32 %v337, %v1460
    %v1499 = vadd.f32 %v343, %v1462
    %v1500 = vadd.f32 %v347, %v1464
    %v1501 = vadd.f32 %v353, %v1466
    %v1502 = vadd.f32 %v357, %v1468
    %v1503 = vadd.f32 %v363, %v1470
    %v1504 = vadd.f32 %v367, %v1472
    %v1505 = vrot.slane %v293, 2
    %v1506 = vrot.slane %v297, 2
    %v1507 = vsel %vm550, %v1505, %v1506
    %v1508 = vrot.slane %v303, 2
    %v1509 = vrot.slane %v307, 2
    %v1510 = vsel %vm550, %v1508, %v1509
    %v1511 = vrot.slane %v313, 2
    %v1512 = vrot.slane %v317, 2
    %v1513 = vsel %vm550, %v1511, %v1512
    %v1514 = vrot.slane %v323, 2
    %v1515 = vrot.slane %v327, 2
    %v1516 = vsel %vm550, %v1514, %v1515
    %v1517 = vrot.slane %v333, 2
    %v1518 = vrot.slane %v337, 2
    %v1519 = vsel %vm550, %v1517, %v1518
    %v1520 = vrot.slane %v343, 2
    %v1521 = vrot.slane %v347, 2
    %v1522 = vsel %vm550, %v1520, %v1521
    %v1523 = vrot.slane %v353, 2
    %v1524 = vrot.slane %v357, 2
    %v1525 = vsel %vm550, %v1523, %v1524
    %v1526 = vrot.slane %v363, 2
    %v1527 = vrot.slane %v367, 2
    %v1528 = vsel %vm550, %v1526, %v1527
    %1529 = vrot.lane.b32.xlu0 %v1507, 88
    %v1530 = vpop.permute.xlu0 %1529
    %1531 = vrot.lane.b32.xlu0 %v1506, 88
    %v1532 = vpop.permute.xlu0 %1531
    %1533 = vrot.lane.b32.xlu0 %v1510, 88
    %v1534 = vpop.permute.xlu0 %1533
    %1535 = vrot.lane.b32.xlu0 %v1509, 88
    %v1536 = vpop.permute.xlu0 %1535
    %1537 = vrot.lane.b32.xlu0 %v1513, 88
    %v1538 = vpop.permute.xlu0 %1537
    %1539 = vrot.lane.b32.xlu0 %v1512, 88
    %v1540 = vpop.permute.xlu0 %1539
    %1541 = vrot.lane.b32.xlu0 %v1516, 88
    %v1542 = vpop.permute.xlu0 %1541
    %1543 = vrot.lane.b32.xlu0 %v1515, 88
    %v1544 = vpop.permute.xlu0 %1543
    %1545 = vrot.lane.b32.xlu0 %v1519, 88
    %v1546 = vpop.permute.xlu0 %1545
    %1547 = vrot.lane.b32.xlu0 %v1518, 88
    %v1548 = vpop.permute.xlu0 %1547
    %1549 = vrot.lane.b32.xlu0 %v1522, 88
    %v1550 = vpop.permute.xlu0 %1549
    %1551 = vrot.lane.b32.xlu0 %v1521, 88
    %v1552 = vpop.permute.xlu0 %1551
    %1553 = vrot.lane.b32.xlu0 %v1525, 88
    %v1554 = vpop.permute.xlu0 %1553
    %1555 = vrot.lane.b32.xlu0 %v1524, 88
    %v1556 = vpop.permute.xlu0 %1555
    %1557 = vrot.lane.b32.xlu0 %v1528, 88
    %v1558 = vpop.permute.xlu0 %1557
    %1559 = vrot.lane.b32.xlu0 %v1527, 88
    %v1560 = vpop.permute.xlu0 %1559
    %v1577 = vadd.f32 %v1489, %v1530
    %v1578 = vadd.f32 %v1490, %v1532
    %v1579 = vadd.f32 %v1491, %v1534
    %v1580 = vadd.f32 %v1492, %v1536
    %v1581 = vadd.f32 %v1493, %v1538
    %v1582 = vadd.f32 %v1494, %v1540
    %v1583 = vadd.f32 %v1495, %v1542
    %v1584 = vadd.f32 %v1496, %v1544
    %v1585 = vadd.f32 %v1497, %v1546
    %v1586 = vadd.f32 %v1498, %v1548
    %v1587 = vadd.f32 %v1499, %v1550
    %v1588 = vadd.f32 %v1500, %v1552
    %v1589 = vadd.f32 %v1501, %v1554
    %v1590 = vadd.f32 %v1502, %v1556
    %v1591 = vadd.f32 %v1503, %v1558
    %v1592 = vadd.f32 %v1504, %v1560
    %v1609 = vadd.f32 %v1577, %v1174
    %v1610 = vadd.f32 %v1578, %v1176
    %v1611 = vadd.f32 %v1579, %v1178
    %v1612 = vadd.f32 %v1580, %v1180
    %v1613 = vadd.f32 %v1581, %v1182
    %v1614 = vadd.f32 %v1582, %v1184
    %v1615 = vadd.f32 %v1583, %v1186
    %v1616 = vadd.f32 %v1584, %v1188
    %v1617 = vadd.f32 %v1585, %v1190
    %v1618 = vadd.f32 %v1586, %v1192
    %v1619 = vadd.f32 %v1587, %v1194
    %v1620 = vadd.f32 %v1588, %v1196
    %v1621 = vadd.f32 %v1589, %v1198
    %v1622 = vadd.f32 %v1590, %v1200
    %v1623 = vadd.f32 %v1591, %v1202
    %v1624 = vadd.f32 %v1592, %v1204
    %v1625 = vadd.f32 %v1609, %v1280
    %v1626 = vadd.f32 %v1610, %v1282
    %v1627 = vadd.f32 %v1611, %v1284
    %v1628 = vadd.f32 %v1612, %v1286
    %v1629 = vadd.f32 %v1613, %v1288
    %v1630 = vadd.f32 %v1614, %v1290
    %v1631 = vadd.f32 %v1615, %v1292
    %v1632 = vadd.f32 %v1616, %v1294
    %v1633 = vadd.f32 %v1617, %v1296
    %v1634 = vadd.f32 %v1618, %v1298
    %v1635 = vadd.f32 %v1619, %v1300
    %v1636 = vadd.f32 %v1620, %v1302
    %v1637 = vadd.f32 %v1621, %v1304
    %v1638 = vadd.f32 %v1622, %v1306
    %v1639 = vadd.f32 %v1623, %v1308
    %v1640 = vadd.f32 %v1624, %v1310
    %vm1657 = vcmask 1042432
    %v1658 = vrot.slane %v293, 5
    %v1659 = vrot.slane %v297, 5
    %v1660 = vsel %vm1657, %v1658, %v1659
    %v1661 = vrot.slane %v295, 5
    %v1662 = vrot.slane %v299, 5
    %v1663 = vsel %vm1657, %v1661, %v1662
    %v1664 = vrot.slane %v303, 5
    %v1665 = vrot.slane %v307, 5
    %v1666 = vsel %vm1657, %v1664, %v1665
    %v1667 = vrot.slane %v305, 5
    %v1668 = vrot.slane %v309, 5
    %v1669 = vsel %vm1657, %v1667, %v1668
    %v1670 = vrot.slane %v313, 5
    %v1671 = vrot.slane %v317, 5
    %v1672 = vsel %vm1657, %v1670, %v1671
    %v1673 = vrot.slane %v315, 5
    %v1674 = vrot.slane %v319, 5
    %v1675 = vsel %vm1657, %v1673, %v1674
    %v1676 = vrot.slane %v323, 5
    %v1677 = vrot.slane %v327, 5
    %v1678 = vsel %vm1657, %v1676, %v1677
    %v1679 = vrot.slane %v325, 5
    %v1680 = vrot.slane %v329, 5
    %v1681 = vsel %vm1657, %v1679, %v1680
    %v1682 = vrot.slane %v333, 5
    %v1683 = vrot.slane %v337, 5
    %v1684 = vsel %vm1657, %v1682, %v1683
    %v1685 = vrot.slane %v335, 5
    %v1686 = vrot.slane %v339, 5
    %v1687 = vsel %vm1657, %v1685, %v1686
    %v1688 = vrot.slane %v343, 5
    %v1689 = vrot.slane %v347, 5
    %v1690 = vsel %vm1657, %v1688, %v1689
    %v1691 = vrot.slane %v345, 5
    %v1692 = vrot.slane %v349, 5
    %v1693 = vsel %vm1657, %v1691, %v1692
    %v1694 = vrot.slane %v353, 5
    %v1695 = vrot.slane %v357, 5
    %v1696 = vsel %vm1657, %v1694, %v1695
    %v1697 = vrot.slane %v355, 5
    %v1698 = vrot.slane %v359, 5
    %v1699 = vsel %vm1657, %v1697, %v1698
    %v1700 = vrot.slane %v363, 5
    %v1701 = vrot.slane %v367, 5
    %v1702 = vsel %vm1657, %v1700, %v1701
    %v1703 = vrot.slane %v365, 5
    %v1704 = vrot.slane %v369, 5
    %v1705 = vsel %vm1657, %v1703, %v1704
    %1706 = vrot.lane.b32.xlu0 %v1660, 28
    %v1707 = vpop.permute.xlu0 %1706
    %1708 = vrot.lane.b32.xlu0 %v1663, 28
    %v1709 = vpop.permute.xlu0 %1708
    %1710 = vrot.lane.b32.xlu0 %v1659, 28
    %v1711 = vpop.permute.xlu0 %1710
    %1712 = vrot.lane.b32.xlu0 %v1662, 28
    %v1713 = vpop.permute.xlu0 %1712
    %1714 = vrot.lane.b32.xlu0 %v1666, 28
    %v1715 = vpop.permute.xlu0 %1714
    %1716 = vrot.lane.b32.xlu0 %v1669, 28
    %v1717 = vpop.permute.xlu0 %1716
    %1718 = vrot.lane.b32.xlu0 %v1665, 28
    %v1719 = vpop.permute.xlu0 %1718
    %1720 = vrot.lane.b32.xlu0 %v1668, 28
    %v1721 = vpop.permute.xlu0 %1720
    %1722 = vrot.lane.b32.xlu0 %v1672, 28
    %v1723 = vpop.permute.xlu0 %1722
    %1724 = vrot.lane.b32.xlu0 %v1675, 28
    %v1725 = vpop.permute.xlu0 %1724
    %1726 = vrot.lane.b32.xlu0 %v1671, 28
    %v1727 = vpop.permute.xlu0 %1726
    %1728 = vrot.lane.b32.xlu0 %v1674, 28
    %v1729 = vpop.permute.xlu0 %1728
    %1730 = vrot.lane.b32.xlu0 %v1678, 28
    %v1731 = vpop.permute.xlu0 %1730
    %1732 = vrot.lane.b32.xlu0 %v1681, 28
    %v1733 = vpop.permute.xlu0 %1732
    %1734 = vrot.lane.b32.xlu0 %v1677, 28
    %v1735 = vpop.permute.xlu0 %1734
    %1736 = vrot.lane.b32.xlu0 %v1680, 28
    %v1737 = vpop.permute.xlu0 %1736
    %1738 = vrot.lane.b32.xlu0 %v1684, 28
    %v1739 = vpop.permute.xlu0 %1738
    %1740 = vrot.lane.b32.xlu0 %v1687, 28
    %v1741 = vpop.permute.xlu0 %1740
    %1742 = vrot.lane.b32.xlu0 %v1683, 28
    %v1743 = vpop.permute.xlu0 %1742
    %1744 = vrot.lane.b32.xlu0 %v1686, 28
    %v1745 = vpop.permute.xlu0 %1744
    %1746 = vrot.lane.b32.xlu0 %v1690, 28
    %v1747 = vpop.permute.xlu0 %1746
    %1748 = vrot.lane.b32.xlu0 %v1693, 28
    %v1749 = vpop.permute.xlu0 %1748
    %1750 = vrot.lane.b32.xlu0 %v1689, 28
    %v1751 = vpop.permute.xlu0 %1750
    %1752 = vrot.lane.b32.xlu0 %v1692, 28
    %v1753 = vpop.permute.xlu0 %1752
    %1754 = vrot.lane.b32.xlu0 %v1696, 28
    %v1755 = vpop.permute.xlu0 %1754
    %1756 = vrot.lane.b32.xlu0 %v1699, 28
    %v1757 = vpop.permute.xlu0 %1756
    %1758 = vrot.lane.b32.xlu0 %v1695, 28
    %v1759 = vpop.permute.xlu0 %1758
    %1760 = vrot.lane.b32.xlu0 %v1698, 28
    %v1761 = vpop.permute.xlu0 %1760
    %1762 = vrot.lane.b32.xlu0 %v1702, 28
    %v1763 = vpop.permute.xlu0 %1762
    %1764 = vrot.lane.b32.xlu0 %v1705, 28
    %v1765 = vpop.permute.xlu0 %1764
    %1766 = vrot.lane.b32.xlu0 %v1701, 28
    %v1767 = vpop.permute.xlu0 %1766
    %1768 = vrot.lane.b32.xlu0 %v1704, 28
    %v1769 = vpop.permute.xlu0 %1768
    %vm1770 = vcmask 228352
    %v1771 = vsel %vm1770, %v1707, %v1709
    %v1772 = vsel %vm1770, %v1711, %v1713
    %v1773 = vsel %vm1770, %v1715, %v1717
    %v1774 = vsel %vm1770, %v1719, %v1721
    %v1775 = vsel %vm1770, %v1723, %v1725
    %v1776 = vsel %vm1770, %v1727, %v1729
    %v1777 = vsel %vm1770, %v1731, %v1733
    %v1778 = vsel %vm1770, %v1735, %v1737
    %v1779 = vsel %vm1770, %v1739, %v1741
    %v1780 = vsel %vm1770, %v1743, %v1745
    %v1781 = vsel %vm1770, %v1747, %v1749
    %v1782 = vsel %vm1770, %v1751, %v1753
    %v1783 = vsel %vm1770, %v1755, %v1757
    %v1784 = vsel %vm1770, %v1759, %v1761
    %v1785 = vsel %vm1770, %v1763, %v1765
    %v1786 = vsel %vm1770, %v1767, %v1769
    %v1803 = vadd.f32 %v1625, %v1771
    %v1804 = vadd.f32 %v1626, %v1772
    %v1805 = vadd.f32 %v1627, %v1773
    %v1806 = vadd.f32 %v1628, %v1774
    %v1807 = vadd.f32 %v1629, %v1775
    %v1808 = vadd.f32 %v1630, %v1776
    %v1809 = vadd.f32 %v1631, %v1777
    %v1810 = vadd.f32 %v1632, %v1778
    %v1811 = vadd.f32 %v1633, %v1779
    %v1812 = vadd.f32 %v1634, %v1780
    %v1813 = vadd.f32 %v1635, %v1781
    %v1814 = vadd.f32 %v1636, %v1782
    %v1815 = vadd.f32 %v1637, %v1783
    %v1816 = vadd.f32 %v1638, %v1784
    %v1817 = vadd.f32 %v1639, %v1785
    %v1818 = vadd.f32 %v1640, %v1786
    %vm1819 = vcmask 359616
    %v1820 = vsel %vm1819, %v1803, -inf
    %vm1821 = vcmask 354496
    %v1822 = vsel %vm1821, %v1804, -inf
    %v1823 = vmax.f32 %v1820, %v1822
    %v1824 = vrot.slane %v1823, 4
    %v1825 = vmax.f32 %v1823, %v1824
    %v1826 = vrot.slane %v1825, 2
    %v1827 = vmax.f32 %v1825, %v1826
    %v1828 = vrot.slane %v1827, 1
    %v1829 = vmax.f32 %v1827, %v1828
    %v1830 = vsel %vm1819, %v1805, -inf
    %v1831 = vsel %vm1821, %v1806, -inf
    %v1832 = vmax.f32 %v1830, %v1831
    %v1833 = vrot.slane %v1832, 4
    %v1834 = vmax.f32 %v1832, %v1833
    %v1835 = vrot.slane %v1834, 2
    %v1836 = vmax.f32 %v1834, %v1835
    %v1837 = vrot.slane %v1836, 1
    %v1838 = vmax.f32 %v1836, %v1837
    %v1839 = vsel %vm1819, %v1807, -inf
    %v1840 = vsel %vm1821, %v1808, -inf
    %v1841 = vmax.f32 %v1839, %v1840
    %v1842 = vrot.slane %v1841, 4
    %v1843 = vmax.f32 %v1841, %v1842
    %v1844 = vrot.slane %v1843, 2
    %v1845 = vmax.f32 %v1843, %v1844
    %v1846 = vrot.slane %v1845, 1
    %v1847 = vmax.f32 %v1845, %v1846
    %v1848 = vsel %vm1819, %v1809, -inf
    %v1849 = vsel %vm1821, %v1810, -inf
    %v1850 = vmax.f32 %v1848, %v1849
    %v1851 = vrot.slane %v1850, 4
    %v1852 = vmax.f32 %v1850, %v1851
    %v1853 = vrot.slane %v1852, 2
    %v1854 = vmax.f32 %v1852, %v1853
    %v1855 = vrot.slane %v1854, 1
    %v1856 = vmax.f32 %v1854, %v1855
    %v1857 = vsel %vm1819, %v1811, -inf
    %v1858 = vsel %vm1821, %v1812, -inf
    %v1859 = vmax.f32 %v1857, %v1858
    %v1860 = vrot.slane %v1859, 4
    %v1861 = vmax.f32 %v1859, %v1860
    %v1862 = vrot.slane %v1861, 2
    %v1863 = vmax.f32 %v1861, %v1862
    %v1864 = vrot.slane %v1863, 1
    %v1865 = vmax.f32 %v1863, %v1864
    %v1866 = vsel %vm1819, %v1813, -inf
    %v1867 = vsel %vm1821, %v1814, -inf
    %v1868 = vmax.f32 %v1866, %v1867
    %v1869 = vrot.slane %v1868, 4
    %v1870 = vmax.f32 %v1868, %v1869
    %v1871 = vrot.slane %v1870, 2
    %v1872 = vmax.f32 %v1870, %v1871
    %v1873 = vrot.slane %v1872, 1
    %v1874 = vmax.f32 %v1872, %v1873
    %v1875 = vsel %vm1819, %v1815, -inf
    %v1876 = vsel %vm1821, %v1816, -inf
    %v1877 = vmax.f32 %v1875, %v1876
    %v1878 = vrot.slane %v1877, 4
    %v1879 = vmax.f32 %v1877, %v1878
    %v1880 = vrot.slane %v1879, 2
    %v1881 = vmax.f32 %v1879, %v1880
    %v1882 = vrot.slane %v1881, 1
    %v1883 = vmax.f32 %v1881, %v1882
    %v1884 = vsel %vm1819, %v1817, -inf
    %v1885 = vsel %vm1821, %v1818, -inf
    %v1886 = vmax.f32 %v1884, %v1885
    %v1887 = vrot.slane %v1886, 4
    %v1888 = vmax.f32 %v1886, %v1887
    %v1889 = vrot.slane %v1888, 2
    %v1890 = vmax.f32 %v1888, %v1889
    %v1891 = vrot.slane %v1890, 1
    %v1892 = vmax.f32 %v1890, %v1891
    %vm1901 = vcmask 1041409
    %v1902 = vsel %vm1901, %v495, %v486
    %vm1903 = vcmask 1042434
    %v1904 = vsel %vm1903, %v504, %v1902
    %vm1905 = vcmask 1043459
    %v1906 = vsel %vm1905, %v513, %v1904
    %vm1907 = vcmask 1044484
    %v1908 = vsel %vm1907, %v522, %v1906
    %vm1909 = vcmask 1045509
    %v1910 = vsel %vm1909, %v531, %v1908
    %vm1911 = vcmask 1046534
    %v1912 = vsel %vm1911, %v540, %v1910
    %vm1913 = vcmask 1047559
    %v1914 = vsel %vm1913, %v549, %v1912
    %v1924 = vsel %vm1901, %v658, %v649
    %v1925 = vsel %vm1903, %v667, %v1924
    %v1926 = vsel %vm1905, %v676, %v1925
    %v1927 = vsel %vm1907, %v685, %v1926
    %v1928 = vsel %vm1909, %v694, %v1927
    %v1929 = vsel %vm1911, %v703, %v1928
    %v1930 = vsel %vm1913, %v712, %v1929
    %1931 = vrot.lane.b32.xlu0 %v1930, 108
    %v1932 = vpop.permute.xlu0 %1931
    %v1942 = vsel %vm1901, %v1030, %v1021
    %v1943 = vsel %vm1903, %v1039, %v1942
    %v1944 = vsel %vm1905, %v1048, %v1943
    %v1945 = vsel %vm1907, %v1057, %v1944
    %v1946 = vsel %vm1909, %v1066, %v1945
    %v1947 = vsel %vm1911, %v1075, %v1946
    %v1948 = vsel %vm1913, %v1084, %v1947
    %1949 = vrot.lane.b32.xlu0 %v1948, 68
    %v1950 = vpop.permute.xlu0 %1949
    %v1960 = vsel %vm1901, %v1362, %v1353
    %v1961 = vsel %vm1903, %v1371, %v1960
    %v1962 = vsel %vm1905, %v1380, %v1961
    %v1963 = vsel %vm1907, %v1389, %v1962
    %v1964 = vsel %vm1909, %v1398, %v1963
    %v1965 = vsel %vm1911, %v1407, %v1964
    %v1966 = vsel %vm1913, %v1416, %v1965
    %1967 = vrot.lane.b32.xlu0 %v1966, 8
    %v1968 = vpop.permute.xlu0 %1967
    %v1978 = vsel %vm1901, %v1838, %v1829
    %v1979 = vsel %vm1903, %v1847, %v1978
    %v1980 = vsel %vm1905, %v1856, %v1979
    %v1981 = vsel %vm1907, %v1865, %v1980
    %v1982 = vsel %vm1909, %v1874, %v1981
    %v1983 = vsel %vm1911, %v1883, %v1982
    %v1984 = vsel %vm1913, %v1892, %v1983
    %1985 = vrot.lane.b32.xlu0 %v1984, 56
    %v1986 = vpop.permute.xlu0 %1985
    %v1988 = vsel %vm476, %v1914, %v1932
    %vm1989 = vcmask 326656
    %v1990 = vsel %vm1989, %v1988, %v1950
    %vm1991 = vcmask 490496
    %v1992 = vsel %vm1991, %v1990, %v1968
    %vm1993 = vcmask 654336
    %v1994 = vsel %vm1993, %v1992, %v1986
    %vm1995 = vcmask 818176
    %v1996 = vsel %vm1995, %v1994, 0.0
    %v1997 = vld [vmem:[%s2] sm:$0x1]
    %v1999 = vlaneseq
    %v2000 = vshrl.u32 %v1999, 7
    %v2001 = vsub.s32 0, %v2000
    %v2002 = vrot.slane %v1997, %v2001
    %v2004 = vadd.f32 %v1996, %v2002
    %v2005 = vmax.f32 %v2004, 0.0
    %s2006 = smul.u32 0, 8
    %v2007 = vlaneseq
    %v2008 = vshrl.u32 %v2007, 7
    %v2009 = vstv %s2006
    %v2010 = vadd.s32 %v2009, %v2008
    %vm2011 = vcmp.lt.s32.totalorder %v2010, 6
    %v2012 = vsel %vm2011, %v2005, 0.0
    %v2013 = vadd.f32 %v2012, 0.0
    %2014 = vst [vmem:[#allocation2] sm:$0xff] %v2013
    // Predicated region
    $region14: #{tpu_custom_call.1} parent=1 // pred_check
      _
    $region15: #{tpu_custom_call.1} parent=1 // pred_check_branch
      %2016 = sbr.rel (0) target = $region17
    $region16: #{tpu_custom_call.1} parent=1 // pred_region
      %s2018 = ssub.s32 128, 128
      %2019 = vsyncadd [#allocation3], %s2018
      %s2021 = sshll.u32 [#allocation2], 4
      %s2022 = int_to_ptr.vmem [resolvable:$true] %s2021
      %2024 = dma.vmem_to_hbm [thread:$0]  %s2022, 128, %s3, [#allocation3]
    $region17: #{tpu_custom_call.1} parent=1 // pred_fallthru
      _
    // Predicated region
    $region18: #{tpu_custom_call.1} parent=1 // pred_check
      _
    $region19: #{tpu_custom_call.1} parent=1 // pred_check_branch
      %2026 = sbr.rel (0) target = $region21
    $region20: #{tpu_custom_call.1} parent=1 // pred_region
      %2027 = dma.done [#allocation3], 128
    $region21: #{tpu_custom_call.1} parent=1 // pred_fallthru
      _
    %2028 = vsyncpa [#allocation3], 1

</llo_original>
